<compile_context>
chip_gen: v7x
topology: tpu7x:2x2x1
jax: 0.10.0
libtpu: 0.0.40
codegen_flags: <defaults>
</compile_context>

<pallas_src>
import jax
import jax.numpy as jnp
import numpy as np
from jax.experimental import pallas as pl
from jax.experimental.pallas import tpu as pltpu

# ---- configuration (irreps collapsed to scalar channel counts, lane-dense) ----
C_IN = 128          # irreps_node_input  = "128x0e"
C_MID = 3 * C_IN    # irreps_mlp_mid     = "384x0e"  (3x input, Equiformer convention)
C_OUT = 128         # irreps_node_output = "128x0e"
N_NODES = 256       # number of nodes in the example graph
TN = 256            # row tile size -> grid=(1,) at N=256; sweep 512-1024 if N grows
MID_CHUNK = 128     # C_MID processed in 128-lane chunks to bound vreg pressure


# ---------------- Pallas kernel ----------------

def _ffn_kernel(x_ref, w1_ref, b1_ref, w2_ref, b2_ref, o_ref, acc_ref):
    # fctp_1 (Linear + bias, scalar attr == 1) + SwishGate (SiLU) + fctp_2 (Linear + bias)
    x = x_ref[...]                                    # (TN, C_IN) bf16, stays resident
    acc_ref[...] = jnp.zeros_like(acc_ref)            # f32 VMEM accumulator

    n_chunks = w1_ref.shape[1] // MID_CHUNK           # static (3) -> fully unrolled
    for c in range(n_chunks):
        lo = c * MID_CHUNK
        hi = lo + MID_CHUNK
        # first matmul chunk, f32 accumulation on the MXU
        h = jnp.dot(x, w1_ref[:, lo:hi], preferred_element_type=jnp.float32)
        # bias + SiLU in f32 (v5e-safe; elementwise is not the binding slot)
        h = jax.nn.silu(h + b1_ref[:, lo:hi])
        # second matmul chunk accumulates into VMEM scratch (bf16 MXU inputs, f32 acc)
        acc_ref[...] += jnp.dot(h.astype(jnp.bfloat16), w2_ref[lo:hi, :],
                                preferred_element_type=jnp.float32)

    # TODO(synk): EquivariantDropout (proj_drop=0.1) is an inference-mode identity here.
    o_ref[...] = (acc_ref[...] + b2_ref[...]).astype(o_ref.dtype)


def feed_forward_network(x, p, *, tn=TN):
    n, cin = x.shape
    cmid = p['w1'].shape[1]
    cout = p['w2'].shape[1]

    flops = 2 * n * (cin * cmid + cmid * cout)
    transcendentals = n * cmid                         # one exp per SiLU
    bytes_accessed = (
        x.size * x.dtype.itemsize
        + sum(int(v.size) * v.dtype.itemsize
              for v in (p['w1'], p['b1'], p['w2'], p['b2']))
        + n * cout * 2                                 # bf16 output
    )

    return pl.pallas_call(
        _ffn_kernel,
        out_shape=jax.ShapeDtypeStruct((n, cout), jnp.bfloat16),
        grid=(pl.cdiv(n, tn),),
        in_specs=[
            pl.BlockSpec((tn, cin), lambda i: (i, 0)),     # node features (row tile, bf16)
            pl.BlockSpec((cin, cmid), lambda i: (0, 0)),   # w1 (bf16, resident)
            pl.BlockSpec((1, cmid), lambda i: (0, 0)),     # b1 (f32)
            pl.BlockSpec((cmid, cout), lambda i: (0, 0)),  # w2 (bf16, resident)
            pl.BlockSpec((1, cout), lambda i: (0, 0)),     # b2 (f32)
        ],
        out_specs=pl.BlockSpec((tn, cout), lambda i: (i, 0)),
        scratch_shapes=[pltpu.VMEM((tn, cout), jnp.float32)],  # f32 accumulator
        compiler_params=pltpu.CompilerParams(
            dimension_semantics=("arbitrary",)),
        cost_estimate=pl.CostEstimate(
            flops=flops,
            transcendentals=transcendentals,
            bytes_accessed=bytes_accessed),
    )(x, p['w1'], p['b1'], p['w2'], p['b2'])


# ---------------- pure-JAX reference (same math, f32) ----------------

def reference_forward(p, x):
    xf = x.astype(jnp.float32)
    w1 = p['w1'].astype(jnp.float32)
    w2 = p['w2'].astype(jnp.float32)
    h = jax.nn.silu(xf @ w1 + p['b1'])
    return h @ w2 + p['b2']


# ---------------- deterministic parameter init ----------------

def init_params(key):
    k1, k2, k3, k4 = jax.random.split(key, 4)

    def lin(k, fi, fo):
        # rescale factor of FullyConnectedTensorProductRescale absorbed here
        return (jax.random.normal(k, (fi, fo), jnp.float32)
                / jnp.sqrt(float(fi))).astype(jnp.bfloat16)

    return {
        'w1': lin(k1, C_IN, C_MID),
        'b1': 0.1 * jax.random.normal(k2, (1, C_MID), jnp.float32),
        'w2': lin(k3, C_MID, C_OUT),
        'b2': 0.1 * jax.random.normal(k4, (1, C_OUT), jnp.float32),
    }


if __name__ == "__main__":
    key = jax.random.PRNGKey(0)
    kp, kx = jax.random.split(key, 2)
    params = init_params(kp)

    # activations kept bf16 end-to-end (precision contract: bf16 I/O, f32 accumulation)
    node_input = jax.random.normal(kx, (N_NODES, C_IN), jnp.float32).astype(jnp.bfloat16)

    out = feed_forward_network(node_input, params)
    out = jax.block_until_ready(out)

    ref = reference_forward(params, node_input)
    ref = jax.block_until_ready(ref)

    assert out.shape == (N_NODES, C_OUT)
    if not np.allclose(np.asarray(out, dtype=np.float32), np.asarray(ref),
                       rtol=5e-2, atol=5e-2):
        raise AssertionError("Pallas output deviates from reference")
    print("KERNEL_OK")
</pallas_src>

<mosaic_0001>
module attributes {stable_mosaic.version = 11 : i64} {
  func.func @_ffn_kernel(%arg0: i32, %arg1: memref<256x128xbf16, #tpu.memory_space<vmem>>, %arg2: memref<128x384xbf16, #tpu.memory_space<vmem>>, %arg3: memref<1x384xf32, #tpu.memory_space<vmem>>, %arg4: memref<384x128xbf16, #tpu.memory_space<vmem>>, %arg5: memref<1x128xf32, #tpu.memory_space<vmem>>, %arg6: memref<256x128xbf16, #tpu.memory_space<vmem>>, %arg7: memref<256x128xf32, #tpu.memory_space<vmem>>) attributes {dimension_semantics = [#tpu.dimension_semantics<arbitrary>], iteration_bounds = array<i64: 1>, scalar_prefetch = 0 : i64, scratch_operands = 1 : i64, tpu.core_type = #tpu.core_type<tc>, window_params = [{transform_indices = @transform_0, window_bounds = array<i64: 256, 128>}, {pipeline_mode = #tpu.pipeline_mode<synchronous>, transform_indices = @transform_1, window_bounds = array<i64: 128, 384>}, {pipeline_mode = #tpu.pipeline_mode<synchronous>, transform_indices = @transform_2, window_bounds = array<i64: 1, 384>}, {pipeline_mode = #tpu.pipeline_mode<synchronous>, transform_indices = @transform_3, window_bounds = array<i64: 384, 128>}, {pipeline_mode = #tpu.pipeline_mode<synchronous>, transform_indices = @transform_4, window_bounds = array<i64: 1, 128>}, {transform_indices = @transform_5, window_bounds = array<i64: 256, 128>}]} {
    %c0 = arith.constant 0 : index
    %c0_0 = arith.constant 0 : index
    %0 = vector.load %arg1[%c0, %c0_0] : memref<256x128xbf16, #tpu.memory_space<vmem>>, vector<256x128xbf16>
    %cst = arith.constant 0.000000e+00 : f32
    %1 = vector.broadcast %cst : f32 to vector<256x128xf32>
    %c0_1 = arith.constant 0 : index
    %c0_2 = arith.constant 0 : index
    %2 = vector.load %arg7[%c0_1, %c0_2] : memref<256x128xf32, #tpu.memory_space<vmem>>, vector<256x128xf32>
    tpu.vector_store %arg7[%c0_1, %c0_2], %1 {strides = array<i32>} : memref<256x128xf32, #tpu.memory_space<vmem>>, vector<256x128xf32>,
    %c0_3 = arith.constant 0 : index
    %c0_4 = arith.constant 0 : index
    %3 = vector.load %arg2[%c0_3, %c0_4] : memref<128x384xbf16, #tpu.memory_space<vmem>>, vector<128x128xbf16>
    %cst_5 = arith.constant dense<0.000000e+00> : vector<256x128xf32>
    %4 = tpu.matmul %0, %3, %cst_5 {dimension_numbers = #tpu.dot_dimension_numbers<[1], [0], [0], [1], [0, 0, 1, 1], [], []>} : vector<256x128xbf16>, vector<128x128xbf16>, vector<256x128xf32> -> vector<256x128xf32>
    %c0_6 = arith.constant 0 : index
    %c0_7 = arith.constant 0 : index
    %5 = vector.load %arg3[%c0_6, %c0_7] : memref<1x384xf32, #tpu.memory_space<vmem>>, vector<1x128xf32>
    %6 = vector.broadcast %5 : vector<1x128xf32> to vector<256x128xf32>
    %7 = arith.addf %4, %6 : vector<256x128xf32>
    %8 = arith.negf %7 : vector<256x128xf32>
    %9 = math.exp %8 : vector<256x128xf32>
    %cst_8 = arith.constant 1.000000e+00 : f32
    %10 = vector.broadcast %cst_8 : f32 to vector<256x128xf32>
    %11 = arith.addf %10, %9 : vector<256x128xf32>
    %12 = arith.divf %10, %11 : vector<256x128xf32>
    %13 = arith.mulf %7, %12 : vector<256x128xf32>
    %c0_9 = arith.constant 0 : index
    %c0_10 = arith.constant 0 : index
    %14 = vector.load %arg7[%c0_9, %c0_10] : memref<256x128xf32, #tpu.memory_space<vmem>>, vector<256x128xf32>
    %15 = arith.truncf %13 : vector<256x128xf32> to vector<256x128xbf16>
    %c0_11 = arith.constant 0 : index
    %c0_12 = arith.constant 0 : index
    %16 = vector.load %arg4[%c0_11, %c0_12] : memref<384x128xbf16, #tpu.memory_space<vmem>>, vector<128x128xbf16>
    %cst_13 = arith.constant dense<0.000000e+00> : vector<256x128xf32>
    %17 = tpu.matmul %15, %16, %cst_13 {dimension_numbers = #tpu.dot_dimension_numbers<[1], [0], [0], [1], [0, 0, 1, 1], [], []>} : vector<256x128xbf16>, vector<128x128xbf16>, vector<256x128xf32> -> vector<256x128xf32>
    %18 = arith.addf %14, %17 : vector<256x128xf32>
    %c0_14 = arith.constant 0 : index
    %c0_15 = arith.constant 0 : index
    %19 = vector.load %arg7[%c0_14, %c0_15] : memref<256x128xf32, #tpu.memory_space<vmem>>, vector<256x128xf32>
    tpu.vector_store %arg7[%c0_14, %c0_15], %18 {strides = array<i32>} : memref<256x128xf32, #tpu.memory_space<vmem>>, vector<256x128xf32>,
    %c0_16 = arith.constant 0 : index
    %c128 = arith.constant 128 : index
    %20 = vector.load %arg2[%c0_16, %c128] : memref<128x384xbf16, #tpu.memory_space<vmem>>, vector<128x128xbf16>
    %cst_17 = arith.constant dense<0.000000e+00> : vector<256x128xf32>
    %21 = tpu.matmul %0, %20, %cst_17 {dimension_numbers = #tpu.dot_dimension_numbers<[1], [0], [0], [1], [0, 0, 1, 1], [], []>} : vector<256x128xbf16>, vector<128x128xbf16>, vector<256x128xf32> -> vector<256x128xf32>
    %c0_18 = arith.constant 0 : index
    %c128_19 = arith.constant 128 : index
    %22 = vector.load %arg3[%c0_18, %c128_19] : memref<1x384xf32, #tpu.memory_space<vmem>>, vector<1x128xf32>
    %23 = vector.broadcast %22 : vector<1x128xf32> to vector<256x128xf32>
    %24 = arith.addf %21, %23 : vector<256x128xf32>
    %25 = arith.negf %24 : vector<256x128xf32>
    %26 = math.exp %25 : vector<256x128xf32>
    %cst_20 = arith.constant 1.000000e+00 : f32
    %27 = vector.broadcast %cst_20 : f32 to vector<256x128xf32>
    %28 = arith.addf %27, %26 : vector<256x128xf32>
    %29 = arith.divf %27, %28 : vector<256x128xf32>
    %30 = arith.mulf %24, %29 : vector<256x128xf32>
    %c0_21 = arith.constant 0 : index
    %c0_22 = arith.constant 0 : index
    %31 = vector.load %arg7[%c0_21, %c0_22] : memref<256x128xf32, #tpu.memory_space<vmem>>, vector<256x128xf32>
    %32 = arith.truncf %30 : vector<256x128xf32> to vector<256x128xbf16>
    %c128_23 = arith.constant 128 : index
    %c0_24 = arith.constant 0 : index
    %33 = vector.load %arg4[%c128_23, %c0_24] : memref<384x128xbf16, #tpu.memory_space<vmem>>, vector<128x128xbf16>
    %cst_25 = arith.constant dense<0.000000e+00> : vector<256x128xf32>
    %34 = tpu.matmul %32, %33, %cst_25 {dimension_numbers = #tpu.dot_dimension_numbers<[1], [0], [0], [1], [0, 0, 1, 1], [], []>} : vector<256x128xbf16>, vector<128x128xbf16>, vector<256x128xf32> -> vector<256x128xf32>
    %35 = arith.addf %31, %34 : vector<256x128xf32>
    %c0_26 = arith.constant 0 : index
    %c0_27 = arith.constant 0 : index
    %36 = vector.load %arg7[%c0_26, %c0_27] : memref<256x128xf32, #tpu.memory_space<vmem>>, vector<256x128xf32>
    tpu.vector_store %arg7[%c0_26, %c0_27], %35 {strides = array<i32>} : memref<256x128xf32, #tpu.memory_space<vmem>>, vector<256x128xf32>,
    %c0_28 = arith.constant 0 : index
    %c256 = arith.constant 256 : index
    %37 = vector.load %arg2[%c0_28, %c256] : memref<128x384xbf16, #tpu.memory_space<vmem>>, vector<128x128xbf16>
    %cst_29 = arith.constant dense<0.000000e+00> : vector<256x128xf32>
    %38 = tpu.matmul %0, %37, %cst_29 {dimension_numbers = #tpu.dot_dimension_numbers<[1], [0], [0], [1], [0, 0, 1, 1], [], []>} : vector<256x128xbf16>, vector<128x128xbf16>, vector<256x128xf32> -> vector<256x128xf32>
    %c0_30 = arith.constant 0 : index
    %c256_31 = arith.constant 256 : index
    %39 = vector.load %arg3[%c0_30, %c256_31] : memref<1x384xf32, #tpu.memory_space<vmem>>, vector<1x128xf32>
    %40 = vector.broadcast %39 : vector<1x128xf32> to vector<256x128xf32>
    %41 = arith.addf %38, %40 : vector<256x128xf32>
    %42 = arith.negf %41 : vector<256x128xf32>
    %43 = math.exp %42 : vector<256x128xf32>
    %cst_32 = arith.constant 1.000000e+00 : f32
    %44 = vector.broadcast %cst_32 : f32 to vector<256x128xf32>
    %45 = arith.addf %44, %43 : vector<256x128xf32>
    %46 = arith.divf %44, %45 : vector<256x128xf32>
    %47 = arith.mulf %41, %46 : vector<256x128xf32>
    %c0_33 = arith.constant 0 : index
    %c0_34 = arith.constant 0 : index
    %48 = vector.load %arg7[%c0_33, %c0_34] : memref<256x128xf32, #tpu.memory_space<vmem>>, vector<256x128xf32>
    %49 = arith.truncf %47 : vector<256x128xf32> to vector<256x128xbf16>
    %c256_35 = arith.constant 256 : index
    %c0_36 = arith.constant 0 : index
    %50 = vector.load %arg4[%c256_35, %c0_36] : memref<384x128xbf16, #tpu.memory_space<vmem>>, vector<128x128xbf16>
    %cst_37 = arith.constant dense<0.000000e+00> : vector<256x128xf32>
    %51 = tpu.matmul %49, %50, %cst_37 {dimension_numbers = #tpu.dot_dimension_numbers<[1], [0], [0], [1], [0, 0, 1, 1], [], []>} : vector<256x128xbf16>, vector<128x128xbf16>, vector<256x128xf32> -> vector<256x128xf32>
    %52 = arith.addf %48, %51 : vector<256x128xf32>
    %c0_38 = arith.constant 0 : index
    %c0_39 = arith.constant 0 : index
    %53 = vector.load %arg7[%c0_38, %c0_39] : memref<256x128xf32, #tpu.memory_space<vmem>>, vector<256x128xf32>
    tpu.vector_store %arg7[%c0_38, %c0_39], %52 {strides = array<i32>} : memref<256x128xf32, #tpu.memory_space<vmem>>, vector<256x128xf32>,
    %c0_40 = arith.constant 0 : index
    %c0_41 = arith.constant 0 : index
    %54 = vector.load %arg7[%c0_40, %c0_41] : memref<256x128xf32, #tpu.memory_space<vmem>>, vector<256x128xf32>
    %c0_42 = arith.constant 0 : index
    %c0_43 = arith.constant 0 : index
    %55 = vector.load %arg5[%c0_42, %c0_43] : memref<1x128xf32, #tpu.memory_space<vmem>>, vector<1x128xf32>
    %56 = vector.broadcast %55 : vector<1x128xf32> to vector<256x128xf32>
    %57 = arith.addf %54, %56 : vector<256x128xf32>
    %58 = arith.truncf %57 : vector<256x128xf32> to vector<256x128xbf16>
    %c0_44 = arith.constant 0 : index
    %c0_45 = arith.constant 0 : index
    %59 = vector.load %arg6[%c0_44, %c0_45] : memref<256x128xbf16, #tpu.memory_space<vmem>>, vector<256x128xbf16>
    tpu.vector_store %arg6[%c0_44, %c0_45], %58 {strides = array<i32>} : memref<256x128xbf16, #tpu.memory_space<vmem>>, vector<256x128xbf16>,
    return
  }
  func.func @transform_0(%arg0: i32) -> (i32, i32) {
    %c0_i32 = arith.constant 0 : i32
    %c0_i32_0 = arith.constant 0 : i32
    return %arg0, %c0_i32 : i32, i32
  }
  func.func @transform_1(%arg0: i32) -> (i32, i32) {
    %c0_i32 = arith.constant 0 : i32
    %c0_i32_0 = arith.constant 0 : i32
    %c0_i32_1 = arith.constant 0 : i32
    return %c0_i32, %c0_i32_0 : i32, i32
  }
  func.func @transform_2(%arg0: i32) -> (i32, i32) {
    %c0_i32 = arith.constant 0 : i32
    %c0_i32_0 = arith.constant 0 : i32
    %c0_i32_1 = arith.constant 0 : i32
    return %c0_i32, %c0_i32_0 : i32, i32
  }
  func.func @transform_3(%arg0: i32) -> (i32, i32) {
    %c0_i32 = arith.constant 0 : i32
    %c0_i32_0 = arith.constant 0 : i32
    %c0_i32_1 = arith.constant 0 : i32
    return %c0_i32, %c0_i32_0 : i32, i32
  }
  func.func @transform_4(%arg0: i32) -> (i32, i32) {
    %c0_i32 = arith.constant 0 : i32
    %c0_i32_0 = arith.constant 0 : i32
    %c0_i32_1 = arith.constant 0 : i32
    return %c0_i32, %c0_i32_0 : i32, i32
  }
  func.func @transform_5(%arg0: i32) -> (i32, i32) {
    %c0_i32 = arith.constant 0 : i32
    %c0_i32_0 = arith.constant 0 : i32
    return %arg0, %c0_i32 : i32, i32
  }
}

</mosaic_0001>

<llo_original>
// kernel: tpu_custom_call.1
$region0: #{tpu_custom_call.1}
  #allocation0 [shape = 'u32[]', space=smem, size = 0x4, offset = 0x4, fixed_abs, tag = 'smem constant byte address 0x4 - core index']
  #allocation1 [shape = 'u32[144,128]{1,0:T(1,128)}', space=vmem, size = 0x12000, scoped, tag = 'internal scratch']
  #allocation2 [shape = 'f32[256,128]{1,0:T(8,128)}', space=vmem, size = 0x20000, scoped, tag = 'scratch operand']
  %s0 = inlined_call_operand.hbm [shape: bf16[256,128], index: 0, kind: input, shape index: {}]
  %s1 = inlined_call_operand.hbm [shape: bf16[128,384], index: 1, kind: input, shape index: {}]
  %s2 = inlined_call_operand.vmem [shape: f32[1,384], index: 2, kind: input, shape index: {}]
  %s3 = inlined_call_operand.hbm [shape: bf16[384,128], index: 3, kind: input, shape index: {}]
  %s4 = inlined_call_operand.vmem [shape: f32[1,128], index: 4, kind: input, shape index: {}]
  %s5 = inlined_call_operand.hbm [shape: bf16[256,128], index: 5, kind: output, shape index: {}]
  %s6 = sld [smem:[#allocation0]]
  $region42: #{tpu_custom_call.1} parent=0
    _
  %s8 = ssub.s32 1, %s6
  %s9 = scalar_select 0, %s8, %s6
  $region1: #{tpu_custom_call.1} parent=0
    #allocation3 [shape = 'u8[65536]{0}', space=vmem, size = 0x10000, scoped, tag = 'input window, operand 0, single buffered']
    #allocation4 [shape = 's32[1]{0}', space=sflag, size = 0x4, scoped, tag = 'scoped memory for tpu_custom_call.1']
    #allocation5 [shape = 's32[1]{0}', space=sflag, size = 0x4, scoped, tag = 'scoped memory for tpu_custom_call.1']
    #allocation6 [shape = 'u8[98304]{0}', space=vmem, size = 0x18000, scoped, tag = 'input window, operand 1, single buffered']
    #allocation7 [shape = 's32[1]{0}', space=sflag, size = 0x4, scoped, tag = 'scoped memory for tpu_custom_call.1']
    #allocation8 [shape = 'u8[98304]{0}', space=vmem, size = 0x18000, scoped, tag = 'input window, operand 3, single buffered']
    #allocation9 [shape = 'u8[65536]{0}', space=vmem, size = 0x10000, scoped, tag = 'output window, operand 0, single buffered']
    %10 = vsyncpa [#allocation4], 0
    %11 = vsyncpa [#allocation7], 0
    %12 = vsyncpa [#allocation5], 0
    // Predicated region
    $region2: #{tpu_custom_call.1} parent=1 // pred_check
      _
    $region3: #{tpu_custom_call.1} parent=1 // pred_check_branch
      %14 = sbr.rel (0) target = $region5
    $region4: #{tpu_custom_call.1} parent=1 // pred_region
      %s16 = ssub.s32 2048, 2048
      %17 = vsyncadd [#allocation4], %s16
      %s18 = sshll.u32 [#allocation3], 4
      %s19 = int_to_ptr.vmem [resolvable:$true] %s18
      %24 = dma.hbm_to_vmem [thread:$0]  %s0, 2048, %s19, [#allocation4], 64, 64, 4
    $region5: #{tpu_custom_call.1} parent=1 // pred_fallthru
      _
    // Predicated region
    $region6: #{tpu_custom_call.1} parent=1 // pred_check
      _
    $region7: #{tpu_custom_call.1} parent=1 // pred_check_branch
      %26 = sbr.rel (0) target = $region9
    $region8: #{tpu_custom_call.1} parent=1 // pred_region
      %s28 = ssub.s32 3072, 3072
      %29 = vsyncadd [#allocation7], %s28
      %s30 = sshll.u32 [#allocation6], 4
      %s31 = int_to_ptr.vmem [resolvable:$true] %s30
      %36 = dma.hbm_to_vmem [thread:$0]  %s1, 3072, %s31, [#allocation7], 192, 192, 12
    $region9: #{tpu_custom_call.1} parent=1 // pred_fallthru
      _
    // Predicated region
    $region10: #{tpu_custom_call.1} parent=1 // pred_check
      _
    $region11: #{tpu_custom_call.1} parent=1 // pred_check_branch
      %38 = sbr.rel (0) target = $region13
    $region12: #{tpu_custom_call.1} parent=1 // pred_region
      _
    $region13: #{tpu_custom_call.1} parent=1 // pred_fallthru
      _
    // Predicated region
    $region14: #{tpu_custom_call.1} parent=1 // pred_check
      _
    $region15: #{tpu_custom_call.1} parent=1 // pred_check_branch
      %40 = sbr.rel (0) target = $region17
    $region16: #{tpu_custom_call.1} parent=1 // pred_region
      %s42 = ssub.s32 3072, 3072
      %43 = vsyncadd [#allocation7], %s42
      %s44 = sshll.u32 [#allocation8], 4
      %s45 = int_to_ptr.vmem [resolvable:$true] %s44
      %50 = dma.hbm_to_vmem [thread:$0]  %s3, 3072, %s45, [#allocation7], 64, 64, 4
    $region17: #{tpu_custom_call.1} parent=1 // pred_fallthru
      _
    // Predicated region
    $region18: #{tpu_custom_call.1} parent=1 // pred_check
      _
    $region19: #{tpu_custom_call.1} parent=1 // pred_check_branch
      %52 = sbr.rel (0) target = $region21
    $region20: #{tpu_custom_call.1} parent=1 // pred_region
      _
    $region21: #{tpu_custom_call.1} parent=1 // pred_fallthru
      _
    // Predicated region
    $region22: #{tpu_custom_call.1} parent=1 // pred_check
      _
    $region23: #{tpu_custom_call.1} parent=1 // pred_check_branch
      %54 = sbr.rel (0) target = $region25
    $region24: #{tpu_custom_call.1} parent=1 // pred_region
      %55 = dma.done [#allocation4], 2048
    $region25: #{tpu_custom_call.1} parent=1 // pred_fallthru
      _
    // Predicated region
    $region26: #{tpu_custom_call.1} parent=1 // pred_check
      _
    $region27: #{tpu_custom_call.1} parent=1 // pred_check_branch
      %57 = sbr.rel (0) target = $region29
    $region28: #{tpu_custom_call.1} parent=1 // pred_region
      %58 = dma.done [#allocation7], 3072
    $region29: #{tpu_custom_call.1} parent=1 // pred_fallthru
      _
    // Predicated region
    $region30: #{tpu_custom_call.1} parent=1 // pred_check
      _
    $region31: #{tpu_custom_call.1} parent=1 // pred_check_branch
      %60 = sbr.rel (0) target = $region33
    $region32: #{tpu_custom_call.1} parent=1 // pred_region
      %61 = dma.done [#allocation7], 3072
    $region33: #{tpu_custom_call.1} parent=1 // pred_fallthru
      _
    %v63 = vld [vmem:[#allocation3] sm:$0xf]
    %v64 = vld [vmem:[#allocation3 + $0x4] sm:$0xf]
    %v65 = vld [vmem:[#allocation3 + $0x8] sm:$0xf]
    %v66 = vld [vmem:[#allocation3 + $0xc] sm:$0xf]
    %v67 = vld [vmem:[#allocation3 + $0x10] sm:$0xf]
    %v68 = vld [vmem:[#allocation3 + $0x14] sm:$0xf]
    %v69 = vld [vmem:[#allocation3 + $0x18] sm:$0xf]
    %v70 = vld [vmem:[#allocation3 + $0x1c] sm:$0xf]
    %v71 = vld [vmem:[#allocation3 + $0x20] sm:$0xf]
    %v72 = vld [vmem:[#allocation3 + $0x24] sm:$0xf]
    %v73 = vld [vmem:[#allocation3 + $0x28] sm:$0xf]
    %v74 = vld [vmem:[#allocation3 + $0x2c] sm:$0xf]
    %v75 = vld [vmem:[#allocation3 + $0x30] sm:$0xf]
    %v76 = vld [vmem:[#allocation3 + $0x34] sm:$0xf]
    %v77 = vld [vmem:[#allocation3 + $0x38] sm:$0xf]
    %v78 = vld [vmem:[#allocation3 + $0x3c] sm:$0xf]
    %v79 = vld [vmem:[#allocation3 + $0x40] sm:$0xf]
    %v80 = vld [vmem:[#allocation3 + $0x44] sm:$0xf]
    %v81 = vld [vmem:[#allocation3 + $0x48] sm:$0xf]
    %v82 = vld [vmem:[#allocation3 + $0x4c] sm:$0xf]
    %v83 = vld [vmem:[#allocation3 + $0x50] sm:$0xf]
    %v84 = vld [vmem:[#allocation3 + $0x54] sm:$0xf]
    %v85 = vld [vmem:[#allocation3 + $0x58] sm:$0xf]
    %v86 = vld [vmem:[#allocation3 + $0x5c] sm:$0xf]
    %v87 = vld [vmem:[#allocation3 + $0x60] sm:$0xf]
    %v88 = vld [vmem:[#allocation3 + $0x64] sm:$0xf]
    %v89 = vld [vmem:[#allocation3 + $0x68] sm:$0xf]
    %v90 = vld [vmem:[#allocation3 + $0x6c] sm:$0xf]
    %v91 = vld [vmem:[#allocation3 + $0x70] sm:$0xf]
    %v92 = vld [vmem:[#allocation3 + $0x74] sm:$0xf]
    %v93 = vld [vmem:[#allocation3 + $0x78] sm:$0xf]
    %v94 = vld [vmem:[#allocation3 + $0x7c] sm:$0xf]
    %95 = vst [vmem:[#allocation2] sm:$0xff] 0.0
    %96 = vst [vmem:[#allocation2 + $0x8] sm:$0xff] 0.0
    %97 = vst [vmem:[#allocation2 + $0x10] sm:$0xff] 0.0
    %98 = vst [vmem:[#allocation2 + $0x18] sm:$0xff] 0.0
    %99 = vst [vmem:[#allocation2 + $0x20] sm:$0xff] 0.0
    %100 = vst [vmem:[#allocation2 + $0x28] sm:$0xff] 0.0
    %101 = vst [vmem:[#allocation2 + $0x30] sm:$0xff] 0.0
    %102 = vst [vmem:[#allocation2 + $0x38] sm:$0xff] 0.0
    %103 = vst [vmem:[#allocation2 + $0x40] sm:$0xff] 0.0
    %104 = vst [vmem:[#allocation2 + $0x48] sm:$0xff] 0.0
    %105 = vst [vmem:[#allocation2 + $0x50] sm:$0xff] 0.0
    %106 = vst [vmem:[#allocation2 + $0x58] sm:$0xff] 0.0
    %107 = vst [vmem:[#allocation2 + $0x60] sm:$0xff] 0.0
    %108 = vst [vmem:[#allocation2 + $0x68] sm:$0xff] 0.0
    %109 = vst [vmem:[#allocation2 + $0x70] sm:$0xff] 0.0
    %110 = vst [vmem:[#allocation2 + $0x78] sm:$0xff] 0.0
    %111 = vst [vmem:[#allocation2 + $0x80] sm:$0xff] 0.0
    %112 = vst [vmem:[#allocation2 + $0x88] sm:$0xff] 0.0
    %113 = vst [vmem:[#allocation2 + $0x90] sm:$0xff] 0.0
    %114 = vst [vmem:[#allocation2 + $0x98] sm:$0xff] 0.0
    %115 = vst [vmem:[#allocation2 + $0xa0] sm:$0xff] 0.0
    %116 = vst [vmem:[#allocation2 + $0xa8] sm:$0xff] 0.0
    %117 = vst [vmem:[#allocation2 + $0xb0] sm:$0xff] 0.0
    %118 = vst [vmem:[#allocation2 + $0xb8] sm:$0xff] 0.0
    %119 = vst [vmem:[#allocation2 + $0xc0] sm:$0xff] 0.0
    %120 = vst [vmem:[#allocation2 + $0xc8] sm:$0xff] 0.0
    %121 = vst [vmem:[#allocation2 + $0xd0] sm:$0xff] 0.0
    %122 = vst [vmem:[#allocation2 + $0xd8] sm:$0xff] 0.0
    %123 = vst [vmem:[#allocation2 + $0xe0] sm:$0xff] 0.0
    %124 = vst [vmem:[#allocation2 + $0xe8] sm:$0xff] 0.0
    %125 = vst [vmem:[#allocation2 + $0xf0] sm:$0xff] 0.0
    %126 = vst [vmem:[#allocation2 + $0xf8] sm:$0xff] 0.0
    %v127 = vld [vmem:[#allocation6] sm:$0xf]
    %v128 = vld [vmem:[#allocation6 + $0xc] sm:$0xf]
    %v129 = vld [vmem:[#allocation6 + $0x18] sm:$0xf]
    %v130 = vld [vmem:[#allocation6 + $0x24] sm:$0xf]
    %v131 = vld [vmem:[#allocation6 + $0x30] sm:$0xf]
    %v132 = vld [vmem:[#allocation6 + $0x3c] sm:$0xf]
    %v133 = vld [vmem:[#allocation6 + $0x48] sm:$0xf]
    %v134 = vld [vmem:[#allocation6 + $0x54] sm:$0xf]
    %v135 = vld [vmem:[#allocation6 + $0x60] sm:$0xf]
    %v136 = vld [vmem:[#allocation6 + $0x6c] sm:$0xf]
    %v137 = vld [vmem:[#allocation6 + $0x78] sm:$0xf]
    %v138 = vld [vmem:[#allocation6 + $0x84] sm:$0xf]
    %v139 = vld [vmem:[#allocation6 + $0x90] sm:$0xf]
    %v140 = vld [vmem:[#allocation6 + $0x9c] sm:$0xf]
    %v141 = vld [vmem:[#allocation6 + $0xa8] sm:$0xf]
    %v142 = vld [vmem:[#allocation6 + $0xb4] sm:$0xf]
    %v143 = vld [vmem:[%s2] sm:$0x1]
    %v145 = vlaneseq
    %v146 = vshrl.u32 %v145, 7
    %v147 = vsub.s32 0, %v146
    %v148 = vrot.slane %v143, %v147
    %v182 = vunpack.c.l.b16 %v63
    %v183 = vunpack.c.l.b16 %v64
    %v184 = vunpack.c.l.b16 %v65
    %v185 = vunpack.c.l.b16 %v66
    %v186 = vunpack.c.l.b16 %v67
    %v187 = vunpack.c.l.b16 %v68
    %v188 = vunpack.c.l.b16 %v69
    %v189 = vunpack.c.l.b16 %v70
    %v190 = vunpack.c.l.b16 %v71
    %v191 = vunpack.c.l.b16 %v72
    %v192 = vunpack.c.l.b16 %v73
    %v193 = vunpack.c.l.b16 %v74
    %v194 = vunpack.c.l.b16 %v75
    %v195 = vunpack.c.l.b16 %v76
    %v196 = vunpack.c.l.b16 %v77
    %v197 = vunpack.c.l.b16 %v78
    %v198 = vunpack.c.l.b16 %v79
    %v199 = vunpack.c.l.b16 %v80
    %v200 = vunpack.c.l.b16 %v81
    %v201 = vunpack.c.l.b16 %v82
    %v202 = vunpack.c.l.b16 %v83
    %v203 = vunpack.c.l.b16 %v84
    %v204 = vunpack.c.l.b16 %v85
    %v205 = vunpack.c.l.b16 %v86
    %v206 = vunpack.c.l.b16 %v87
    %v207 = vunpack.c.l.b16 %v88
    %v208 = vunpack.c.l.b16 %v89
    %v209 = vunpack.c.l.b16 %v90
    %v210 = vunpack.c.l.b16 %v91
    %v211 = vunpack.c.l.b16 %v92
    %v212 = vunpack.c.l.b16 %v93
    %v213 = vunpack.c.l.b16 %v94
    %v214 = vpack.c.b16 %v183, %v182
    %v215 = vpack.c.b16 %v185, %v184
    %v216 = vpack.c.b16 %v187, %v186
    %v217 = vpack.c.b16 %v189, %v188
    %v218 = vpack.c.b16 %v191, %v190
    %v219 = vpack.c.b16 %v193, %v192
    %v220 = vpack.c.b16 %v195, %v194
    %v221 = vpack.c.b16 %v197, %v196
    %v222 = vpack.c.b16 %v199, %v198
    %v223 = vpack.c.b16 %v201, %v200
    %v224 = vpack.c.b16 %v203, %v202
    %v225 = vpack.c.b16 %v205, %v204
    %v226 = vpack.c.b16 %v207, %v206
    %v227 = vpack.c.b16 %v209, %v208
    %v228 = vpack.c.b16 %v211, %v210
    %v229 = vpack.c.b16 %v213, %v212
    %v262 = vunpack.c.l.b16 %v127
    %v263 = vunpack.c.l.b16 %v128
    %v264 = vunpack.c.l.b16 %v129
    %v265 = vunpack.c.l.b16 %v130
    %v266 = vunpack.c.l.b16 %v131
    %v267 = vunpack.c.l.b16 %v132
    %v268 = vunpack.c.l.b16 %v133
    %v269 = vunpack.c.l.b16 %v134
    %v270 = vunpack.c.l.b16 %v135
    %v271 = vunpack.c.l.b16 %v136
    %v272 = vunpack.c.l.b16 %v137
    %v273 = vunpack.c.l.b16 %v138
    %v274 = vunpack.c.l.b16 %v139
    %v275 = vunpack.c.l.b16 %v140
    %v276 = vunpack.c.l.b16 %v141
    %v277 = vunpack.c.l.b16 %v142
    %v278 = vpack.c.b16 %v263, %v262
    %v279 = vpack.c.b16 %v265, %v264
    %v280 = vpack.c.b16 %v267, %v266
    %v281 = vpack.c.b16 %v269, %v268
    %v282 = vpack.c.b16 %v271, %v270
    %v283 = vpack.c.b16 %v273, %v272
    %v284 = vpack.c.b16 %v275, %v274
    %v285 = vpack.c.b16 %v277, %v276
    %294 = vmatprep.subr.bf16.mxu0 0
    %295 = vmatpush1.bf16.msra.mxu0 %v278
    %296 = vmatprep.subr.bf16.mxu0 0
    %297 = vmatpush1.bf16.msra.mxu0 %v279
    %298 = vmatprep.subr.bf16.mxu0 0
    %299 = vmatpush1.bf16.msra.mxu0 %v280
    %300 = vmatprep.subr.bf16.mxu0 0
    %301 = vmatpush1.bf16.msra.mxu0 %v281
    %302 = vmatprep.subr.bf16.mxu0 0
    %303 = vmatpush1.bf16.msra.mxu0 %v282
    %304 = vmatprep.subr.bf16.mxu0 0
    %305 = vmatpush1.bf16.msra.mxu0 %v283
    %306 = vmatprep.subr.bf16.mxu0 0
    %307 = vmatpush1.bf16.msra.mxu0 %v284
    %308 = vmatprep.subr.bf16.mxu0 0
    %309 = vmatpush1.bf16.msra.mxu0 %v285
    %310 = vmatprep.subr.bf16.mxu0 0
    %311 = vmatpush1.bf16.msra.mxu0 0
    %312 = vmatprep.subr.bf16.mxu0 0
    %313 = vmatpush1.bf16.msra.mxu0 0
    %314 = vmatprep.subr.bf16.mxu0 0
    %315 = vmatpush1.bf16.msra.mxu0 0
    %316 = vmatprep.subr.bf16.mxu0 0
    %317 = vmatpush1.bf16.msra.mxu0 0
    %318 = vmatprep.subr.bf16.mxu0 0
    %319 = vmatpush1.bf16.msra.mxu0 0
    %320 = vmatprep.subr.bf16.mxu0 0
    %321 = vmatpush1.bf16.msra.mxu0 0
    %322 = vmatprep.subr.bf16.mxu0 0
    %323 = vmatpush1.bf16.msra.mxu0 0
    %324 = vmatprep.subr.bf16.mxu0 0
    %325 = vmatpush1.bf16.msra.mxu0 0
    %326 = vmatprep.mubr.bf16.mxu0 0
    %327 = vmatmul.mubr.bf16.gmra.mrb[0].mxu0 %v214
    %v328 = vpop.f32.mrb[0].mxu0
    %v329 = vadd.f32 %v148, %v328
    %v330 = vpop.f32.mrb[0].mxu0
    %v331 = vpop.f32.mrb[0].mxu0
    %v332 = vadd.f32 %v148, %v331
    %v333 = vpop.f32.mrb[0].mxu0
    %334 = vmatprep.mubr.bf16.mxu0 0
    %335 = vmatmul.mubr.bf16.gmra.mrb[0].mxu0 %v215
    %v336 = vpop.f32.mrb[0].mxu0
    %v337 = vadd.f32 %v148, %v336
    %v338 = vpop.f32.mrb[0].mxu0
    %v339 = vpop.f32.mrb[0].mxu0
    %v340 = vadd.f32 %v148, %v339
    %v341 = vpop.f32.mrb[0].mxu0
    %342 = vmatprep.mubr.bf16.mxu0 0
    %343 = vmatmul.mubr.bf16.gmra.mrb[0].mxu0 %v216
    %v344 = vpop.f32.mrb[0].mxu0
    %v345 = vadd.f32 %v148, %v344
    %v346 = vpop.f32.mrb[0].mxu0
    %v347 = vpop.f32.mrb[0].mxu0
    %v348 = vadd.f32 %v148, %v347
    %v349 = vpop.f32.mrb[0].mxu0
    %350 = vmatprep.mubr.bf16.mxu0 0
    %351 = vmatmul.mubr.bf16.gmra.mrb[0].mxu0 %v217
    %v352 = vpop.f32.mrb[0].mxu0
    %v353 = vadd.f32 %v148, %v352
    %v354 = vpop.f32.mrb[0].mxu0
    %v355 = vpop.f32.mrb[0].mxu0
    %v356 = vadd.f32 %v148, %v355
    %v357 = vpop.f32.mrb[0].mxu0
    %358 = vmatprep.mubr.bf16.mxu0 0
    %359 = vmatmul.mubr.bf16.gmra.mrb[0].mxu0 %v218
    %v360 = vpop.f32.mrb[0].mxu0
    %v361 = vadd.f32 %v148, %v360
    %v362 = vpop.f32.mrb[0].mxu0
    %v363 = vpop.f32.mrb[0].mxu0
    %v364 = vadd.f32 %v148, %v363
    %v365 = vpop.f32.mrb[0].mxu0
    %366 = vmatprep.mubr.bf16.mxu0 0
    %367 = vmatmul.mubr.bf16.gmra.mrb[0].mxu0 %v219
    %v368 = vpop.f32.mrb[0].mxu0
    %v369 = vadd.f32 %v148, %v368
    %v370 = vpop.f32.mrb[0].mxu0
    %v371 = vpop.f32.mrb[0].mxu0
    %v372 = vadd.f32 %v148, %v371
    %v373 = vpop.f32.mrb[0].mxu0
    %374 = vmatprep.mubr.bf16.mxu0 0
    %375 = vmatmul.mubr.bf16.gmra.mrb[0].mxu0 %v220
    %v376 = vpop.f32.mrb[0].mxu0
    %v377 = vadd.f32 %v148, %v376
    %v378 = vpop.f32.mrb[0].mxu0
    %v379 = vpop.f32.mrb[0].mxu0
    %v380 = vadd.f32 %v148, %v379
    %v381 = vpop.f32.mrb[0].mxu0
    %382 = vmatprep.mubr.bf16.mxu0 0
    %383 = vmatmul.mubr.bf16.gmra.mrb[0].mxu0 %v221
    %v384 = vpop.f32.mrb[0].mxu0
    %v385 = vadd.f32 %v148, %v384
    %v386 = vpop.f32.mrb[0].mxu0
    %v387 = vpop.f32.mrb[0].mxu0
    %v388 = vadd.f32 %v148, %v387
    %v389 = vpop.f32.mrb[0].mxu0
    %390 = vmatprep.mubr.bf16.mxu0 0
    %391 = vmatmul.mubr.bf16.gmra.mrb[0].mxu0 %v222
    %v392 = vpop.f32.mrb[0].mxu0
    %v393 = vadd.f32 %v148, %v392
    %v394 = vpop.f32.mrb[0].mxu0
    %v395 = vpop.f32.mrb[0].mxu0
    %v396 = vadd.f32 %v148, %v395
    %v397 = vpop.f32.mrb[0].mxu0
    %398 = vmatprep.mubr.bf16.mxu0 0
    %399 = vmatmul.mubr.bf16.gmra.mrb[0].mxu0 %v223
    %v400 = vpop.f32.mrb[0].mxu0
    %v401 = vadd.f32 %v148, %v400
    %v402 = vpop.f32.mrb[0].mxu0
    %v403 = vpop.f32.mrb[0].mxu0
    %v404 = vadd.f32 %v148, %v403
    %v405 = vpop.f32.mrb[0].mxu0
    %406 = vmatprep.mubr.bf16.mxu0 0
    %407 = vmatmul.mubr.bf16.gmra.mrb[0].mxu0 %v224
    %v408 = vpop.f32.mrb[0].mxu0
    %v409 = vadd.f32 %v148, %v408
    %v410 = vpop.f32.mrb[0].mxu0
    %v411 = vpop.f32.mrb[0].mxu0
    %v412 = vadd.f32 %v148, %v411
    %v413 = vpop.f32.mrb[0].mxu0
    %414 = vmatprep.mubr.bf16.mxu0 0
    %415 = vmatmul.mubr.bf16.gmra.mrb[0].mxu0 %v225
    %v416 = vpop.f32.mrb[0].mxu0
    %v417 = vadd.f32 %v148, %v416
    %v418 = vpop.f32.mrb[0].mxu0
    %v419 = vpop.f32.mrb[0].mxu0
    %v420 = vadd.f32 %v148, %v419
    %v421 = vpop.f32.mrb[0].mxu0
    %422 = vmatprep.mubr.bf16.mxu0 0
    %423 = vmatmul.mubr.bf16.gmra.mrb[0].mxu0 %v226
    %v424 = vpop.f32.mrb[0].mxu0
    %v425 = vadd.f32 %v148, %v424
    %v426 = vpop.f32.mrb[0].mxu0
    %v427 = vpop.f32.mrb[0].mxu0
    %v428 = vadd.f32 %v148, %v427
    %v429 = vpop.f32.mrb[0].mxu0
    %430 = vmatprep.mubr.bf16.mxu0 0
    %431 = vmatmul.mubr.bf16.gmra.mrb[0].mxu0 %v227
    %v432 = vpop.f32.mrb[0].mxu0
    %v433 = vadd.f32 %v148, %v432
    %v434 = vpop.f32.mrb[0].mxu0
    %v435 = vpop.f32.mrb[0].mxu0
    %v436 = vadd.f32 %v148, %v435
    %v437 = vpop.f32.mrb[0].mxu0
    %438 = vmatprep.mubr.bf16.mxu0 0
    %439 = vmatmul.mubr.bf16.gmra.mrb[0].mxu0 %v228
    %v440 = vpop.f32.mrb[0].mxu0
    %v441 = vadd.f32 %v148, %v440
    %v442 = vpop.f32.mrb[0].mxu0
    %v443 = vpop.f32.mrb[0].mxu0
    %v444 = vadd.f32 %v148, %v443
    %v445 = vpop.f32.mrb[0].mxu0
    %446 = vmatprep.mubr.bf16.mxu0 0
    %447 = vmatmul.mubr.bf16.gmra.mrb[0].mxu0 %v229
    %v448 = vpop.f32.mrb[0].mxu0
    %v449 = vadd.f32 %v148, %v448
    %v450 = vpop.f32.mrb[0].mxu0
    %v451 = vpop.f32.mrb[0].mxu0
    %v452 = vadd.f32 %v148, %v451
    %v453 = vpop.f32.mrb[0].mxu0
    %454 = vdwg.mxu0
    %v455 = vxor.u32 %v329, 2147483648
    %v456 = vxor.u32 %v332, 2147483648
    %v457 = vxor.u32 %v337, 2147483648
    %v458 = vxor.u32 %v340, 2147483648
    %v459 = vxor.u32 %v345, 2147483648
    %v460 = vxor.u32 %v348, 2147483648
    %v461 = vxor.u32 %v353, 2147483648
    %v462 = vxor.u32 %v356, 2147483648
    %v463 = vxor.u32 %v361, 2147483648
    %v464 = vxor.u32 %v364, 2147483648
    %v465 = vxor.u32 %v369, 2147483648
    %v466 = vxor.u32 %v372, 2147483648
    %v467 = vxor.u32 %v377, 2147483648
    %v468 = vxor.u32 %v380, 2147483648
    %v469 = vxor.u32 %v385, 2147483648
    %v470 = vxor.u32 %v388, 2147483648
    %v471 = vxor.u32 %v393, 2147483648
    %v472 = vxor.u32 %v396, 2147483648
    %v473 = vxor.u32 %v401, 2147483648
    %v474 = vxor.u32 %v404, 2147483648
    %v475 = vxor.u32 %v409, 2147483648
    %v476 = vxor.u32 %v412, 2147483648
    %v477 = vxor.u32 %v417, 2147483648
    %v478 = vxor.u32 %v420, 2147483648
    %v479 = vxor.u32 %v425, 2147483648
    %v480 = vxor.u32 %v428, 2147483648
    %v481 = vxor.u32 %v433, 2147483648
    %v482 = vxor.u32 %v436, 2147483648
    %v483 = vxor.u32 %v441, 2147483648
    %v484 = vxor.u32 %v444, 2147483648
    %v485 = vxor.u32 %v449, 2147483648
    %v486 = vxor.u32 %v452, 2147483648
    %v487 = vmul.f32 %v455, 1.442695
    %v488 = vpow.pop %v487
    %v489 = vmul.f32 %v456, 1.442695
    %v490 = vpow.pop %v489
    %v491 = vmul.f32 %v457, 1.442695
    %v492 = vpow.pop %v491
    %v493 = vmul.f32 %v458, 1.442695
    %v494 = vpow.pop %v493
    %v495 = vmul.f32 %v459, 1.442695
    %v496 = vpow.pop %v495
    %v497 = vmul.f32 %v460, 1.442695
    %v498 = vpow.pop %v497
    %v499 = vmul.f32 %v461, 1.442695
    %v500 = vpow.pop %v499
    %v501 = vmul.f32 %v462, 1.442695
    %v502 = vpow.pop %v501
    %v503 = vmul.f32 %v463, 1.442695
    %v504 = vpow.pop %v503
    %v505 = vmul.f32 %v464, 1.442695
    %v506 = vpow.pop %v505
    %v507 = vmul.f32 %v465, 1.442695
    %v508 = vpow.pop %v507
    %v509 = vmul.f32 %v466, 1.442695
    %v510 = vpow.pop %v509
    %v511 = vmul.f32 %v467, 1.442695
    %v512 = vpow.pop %v511
    %v513 = vmul.f32 %v468, 1.442695
    %v514 = vpow.pop %v513
    %v515 = vmul.f32 %v469, 1.442695
    %v516 = vpow.pop %v515
    %v517 = vmul.f32 %v470, 1.442695
    %v518 = vpow.pop %v517
    %v519 = vmul.f32 %v471, 1.442695
    %v520 = vpow.pop %v519
    %v521 = vmul.f32 %v472, 1.442695
    %v522 = vpow.pop %v521
    %v523 = vmul.f32 %v473, 1.442695
    %v524 = vpow.pop %v523
    %v525 = vmul.f32 %v474, 1.442695
    %v526 = vpow.pop %v525
    %v527 = vmul.f32 %v475, 1.442695
    %v528 = vpow.pop %v527
    %v529 = vmul.f32 %v476, 1.442695
    %v530 = vpow.pop %v529
    %v531 = vmul.f32 %v477, 1.442695
    %v532 = vpow.pop %v531
    %v533 = vmul.f32 %v478, 1.442695
    %v534 = vpow.pop %v533
    %v535 = vmul.f32 %v479, 1.442695
    %v536 = vpow.pop %v535
    %v537 = vmul.f32 %v480, 1.442695
    %v538 = vpow.pop %v537
    %v539 = vmul.f32 %v481, 1.442695
    %v540 = vpow.pop %v539
    %v541 = vmul.f32 %v482, 1.442695
    %v542 = vpow.pop %v541
    %v543 = vmul.f32 %v483, 1.442695
    %v544 = vpow.pop %v543
    %v545 = vmul.f32 %v484, 1.442695
    %v546 = vpow.pop %v545
    %v547 = vmul.f32 %v485, 1.442695
    %v548 = vpow.pop %v547
    %v549 = vmul.f32 %v486, 1.442695
    %v550 = vpow.pop %v549
    %v551 = vadd.f32 %v488, 1.0
    %v552 = vadd.f32 %v490, 1.0
    %v553 = vadd.f32 %v492, 1.0
    %v554 = vadd.f32 %v494, 1.0
    %v555 = vadd.f32 %v496, 1.0
    %v556 = vadd.f32 %v498, 1.0
    %v557 = vadd.f32 %v500, 1.0
    %v558 = vadd.f32 %v502, 1.0
    %v559 = vadd.f32 %v504, 1.0
    %v560 = vadd.f32 %v506, 1.0
    %v561 = vadd.f32 %v508, 1.0
    %v562 = vadd.f32 %v510, 1.0
    %v563 = vadd.f32 %v512, 1.0
    %v564 = vadd.f32 %v514, 1.0
    %v565 = vadd.f32 %v516, 1.0
    %v566 = vadd.f32 %v518, 1.0
    %v567 = vadd.f32 %v520, 1.0
    %v568 = vadd.f32 %v522, 1.0
    %v569 = vadd.f32 %v524, 1.0
    %v570 = vadd.f32 %v526, 1.0
    %v571 = vadd.f32 %v528, 1.0
    %v572 = vadd.f32 %v530, 1.0
    %v573 = vadd.f32 %v532, 1.0
    %v574 = vadd.f32 %v534, 1.0
    %v575 = vadd.f32 %v536, 1.0
    %v576 = vadd.f32 %v538, 1.0
    %v577 = vadd.f32 %v540, 1.0
    %v578 = vadd.f32 %v542, 1.0
    %v579 = vadd.f32 %v544, 1.0
    %v580 = vadd.f32 %v546, 1.0
    %v581 = vadd.f32 %v548, 1.0
    %v582 = vadd.f32 %v550, 1.0
    %v583 = vrcp.pop %v551
    %v584 = vmul.f32 1.0, %v583
    %v585 = vrcp.pop %v552
    %v586 = vmul.f32 1.0, %v585
    %v587 = vrcp.pop %v553
    %v588 = vmul.f32 1.0, %v587
    %v589 = vrcp.pop %v554
    %v590 = vmul.f32 1.0, %v589
    %v591 = vrcp.pop %v555
    %v592 = vmul.f32 1.0, %v591
    %v593 = vrcp.pop %v556
    %v594 = vmul.f32 1.0, %v593
    %v595 = vrcp.pop %v557
    %v596 = vmul.f32 1.0, %v595
    %v597 = vrcp.pop %v558
    %v598 = vmul.f32 1.0, %v597
    %v599 = vrcp.pop %v559
    %v600 = vmul.f32 1.0, %v599
    %v601 = vrcp.pop %v560
    %v602 = vmul.f32 1.0, %v601
    %v603 = vrcp.pop %v561
    %v604 = vmul.f32 1.0, %v603
    %v605 = vrcp.pop %v562
    %v606 = vmul.f32 1.0, %v605
    %v607 = vrcp.pop %v563
    %v608 = vmul.f32 1.0, %v607
    %v609 = vrcp.pop %v564
    %v610 = vmul.f32 1.0, %v609
    %v611 = vrcp.pop %v565
    %v612 = vmul.f32 1.0, %v611
    %v613 = vrcp.pop %v566
    %v614 = vmul.f32 1.0, %v613
    %v615 = vrcp.pop %v567
    %v616 = vmul.f32 1.0, %v615
    %v617 = vrcp.pop %v568
    %v618 = vmul.f32 1.0, %v617
    %v619 = vrcp.pop %v569
    %v620 = vmul.f32 1.0, %v619
    %v621 = vrcp.pop %v570
    %v622 = vmul.f32 1.0, %v621
    %v623 = vrcp.pop %v571
    %v624 = vmul.f32 1.0, %v623
    %v625 = vrcp.pop %v572
    %v626 = vmul.f32 1.0, %v625
    %v627 = vrcp.pop %v573
    %v628 = vmul.f32 1.0, %v627
    %v629 = vrcp.pop %v574
    %v630 = vmul.f32 1.0, %v629
    %v631 = vrcp.pop %v575
    %v632 = vmul.f32 1.0, %v631
    %v633 = vrcp.pop %v576
    %v634 = vmul.f32 1.0, %v633
    %v635 = vrcp.pop %v577
    %v636 = vmul.f32 1.0, %v635
    %v637 = vrcp.pop %v578
    %v638 = vmul.f32 1.0, %v637
    %v639 = vrcp.pop %v579
    %v640 = vmul.f32 1.0, %v639
    %v641 = vrcp.pop %v580
    %v642 = vmul.f32 1.0, %v641
    %v643 = vrcp.pop %v581
    %v644 = vmul.f32 1.0, %v643
    %v645 = vrcp.pop %v582
    %v646 = vmul.f32 1.0, %v645
    %v647 = vmul.f32 %v329, %v584
    %v648 = vmul.f32 %v332, %v586
    %v649 = vmul.f32 %v337, %v588
    %v650 = vmul.f32 %v340, %v590
    %v651 = vmul.f32 %v345, %v592
    %v652 = vmul.f32 %v348, %v594
    %v653 = vmul.f32 %v353, %v596
    %v654 = vmul.f32 %v356, %v598
    %v655 = vmul.f32 %v361, %v600
    %v656 = vmul.f32 %v364, %v602
    %v657 = vmul.f32 %v369, %v604
    %v658 = vmul.f32 %v372, %v606
    %v659 = vmul.f32 %v377, %v608
    %v660 = vmul.f32 %v380, %v610
    %v661 = vmul.f32 %v385, %v612
    %v662 = vmul.f32 %v388, %v614
    %v663 = vmul.f32 %v393, %v616
    %v664 = vmul.f32 %v396, %v618
    %v665 = vmul.f32 %v401, %v620
    %v666 = vmul.f32 %v404, %v622
    %v667 = vmul.f32 %v409, %v624
    %v668 = vmul.f32 %v412, %v626
    %v669 = vmul.f32 %v417, %v628
    %v670 = vmul.f32 %v420, %v630
    %v671 = vmul.f32 %v425, %v632
    %v672 = vmul.f32 %v428, %v634
    %v673 = vmul.f32 %v433, %v636
    %v674 = vmul.f32 %v436, %v638
    %v675 = vmul.f32 %v441, %v640
    %v676 = vmul.f32 %v444, %v642
    %v677 = vmul.f32 %v449, %v644
    %v678 = vmul.f32 %v452, %v646
    %v679 = vld [vmem:[#allocation2] sm:$0xff]
    %v680 = vld [vmem:[#allocation2 + $0x8] sm:$0xff]
    %v681 = vld [vmem:[#allocation2 + $0x10] sm:$0xff]
    %v682 = vld [vmem:[#allocation2 + $0x18] sm:$0xff]
    %v683 = vld [vmem:[#allocation2 + $0x20] sm:$0xff]
    %v684 = vld [vmem:[#allocation2 + $0x28] sm:$0xff]
    %v685 = vld [vmem:[#allocation2 + $0x30] sm:$0xff]
    %v686 = vld [vmem:[#allocation2 + $0x38] sm:$0xff]
    %v687 = vld [vmem:[#allocation2 + $0x40] sm:$0xff]
    %v688 = vld [vmem:[#allocation2 + $0x48] sm:$0xff]
    %v689 = vld [vmem:[#allocation2 + $0x50] sm:$0xff]
    %v690 = vld [vmem:[#allocation2 + $0x58] sm:$0xff]
    %v691 = vld [vmem:[#allocation2 + $0x60] sm:$0xff]
    %v692 = vld [vmem:[#allocation2 + $0x68] sm:$0xff]
    %v693 = vld [vmem:[#allocation2 + $0x70] sm:$0xff]
    %v694 = vld [vmem:[#allocation2 + $0x78] sm:$0xff]
    %v695 = vld [vmem:[#allocation2 + $0x80] sm:$0xff]
    %v696 = vld [vmem:[#allocation2 + $0x88] sm:$0xff]
    %v697 = vld [vmem:[#allocation2 + $0x90] sm:$0xff]
    %v698 = vld [vmem:[#allocation2 + $0x98] sm:$0xff]
    %v699 = vld [vmem:[#allocation2 + $0xa0] sm:$0xff]
    %v700 = vld [vmem:[#allocation2 + $0xa8] sm:$0xff]
    %v701 = vld [vmem:[#allocation2 + $0xb0] sm:$0xff]
    %v702 = vld [vmem:[#allocation2 + $0xb8] sm:$0xff]
    %v703 = vld [vmem:[#allocation2 + $0xc0] sm:$0xff]
    %v704 = vld [vmem:[#allocation2 + $0xc8] sm:$0xff]
    %v705 = vld [vmem:[#allocation2 + $0xd0] sm:$0xff]
    %v706 = vld [vmem:[#allocation2 + $0xd8] sm:$0xff]
    %v707 = vld [vmem:[#allocation2 + $0xe0] sm:$0xff]
    %v708 = vld [vmem:[#allocation2 + $0xe8] sm:$0xff]
    %v709 = vld [vmem:[#allocation2 + $0xf0] sm:$0xff]
    %v710 = vld [vmem:[#allocation2 + $0xf8] sm:$0xff]
    %v711 = vpack.c.bf16 %v648, %v647
    %v712 = vpack.c.bf16 %v650, %v649
    %v713 = vpack.c.bf16 %v652, %v651
    %v714 = vpack.c.bf16 %v654, %v653
    %v715 = vpack.c.bf16 %v656, %v655
    %v716 = vpack.c.bf16 %v658, %v657
    %v717 = vpack.c.bf16 %v660, %v659
    %v718 = vpack.c.bf16 %v662, %v661
    %v719 = vpack.c.bf16 %v664, %v663
    %v720 = vpack.c.bf16 %v666, %v665
    %v721 = vpack.c.bf16 %v668, %v667
    %v722 = vpack.c.bf16 %v670, %v669
    %v723 = vpack.c.bf16 %v672, %v671
    %v724 = vpack.c.bf16 %v674, %v673
    %v725 = vpack.c.bf16 %v676, %v675
    %v726 = vpack.c.bf16 %v678, %v677
    %v727 = vld [vmem:[#allocation8] sm:$0xf]
    %v728 = vld [vmem:[#allocation8 + $0x4] sm:$0xf]
    %v729 = vld [vmem:[#allocation8 + $0x8] sm:$0xf]
    %v730 = vld [vmem:[#allocation8 + $0xc] sm:$0xf]
    %v731 = vld [vmem:[#allocation8 + $0x10] sm:$0xf]
    %v732 = vld [vmem:[#allocation8 + $0x14] sm:$0xf]
    %v733 = vld [vmem:[#allocation8 + $0x18] sm:$0xf]
    %v734 = vld [vmem:[#allocation8 + $0x1c] sm:$0xf]
    %v735 = vld [vmem:[#allocation8 + $0x20] sm:$0xf]
    %v736 = vld [vmem:[#allocation8 + $0x24] sm:$0xf]
    %v737 = vld [vmem:[#allocation8 + $0x28] sm:$0xf]
    %v738 = vld [vmem:[#allocation8 + $0x2c] sm:$0xf]
    %v739 = vld [vmem:[#allocation8 + $0x30] sm:$0xf]
    %v740 = vld [vmem:[#allocation8 + $0x34] sm:$0xf]
    %v741 = vld [vmem:[#allocation8 + $0x38] sm:$0xf]
    %v742 = vld [vmem:[#allocation8 + $0x3c] sm:$0xf]
    %v759 = vunpack.c.l.b16 %v727
    %v760 = vunpack.c.l.b16 %v728
    %v761 = vunpack.c.l.b16 %v729
    %v762 = vunpack.c.l.b16 %v730
    %v763 = vunpack.c.l.b16 %v731
    %v764 = vunpack.c.l.b16 %v732
    %v765 = vunpack.c.l.b16 %v733
    %v766 = vunpack.c.l.b16 %v734
    %v767 = vunpack.c.l.b16 %v735
    %v768 = vunpack.c.l.b16 %v736
    %v769 = vunpack.c.l.b16 %v737
    %v770 = vunpack.c.l.b16 %v738
    %v771 = vunpack.c.l.b16 %v739
    %v772 = vunpack.c.l.b16 %v740
    %v773 = vunpack.c.l.b16 %v741
    %v774 = vunpack.c.l.b16 %v742
    %v775 = vpack.c.b16 %v760, %v759
    %v776 = vpack.c.b16 %v762, %v761
    %v777 = vpack.c.b16 %v764, %v763
    %v778 = vpack.c.b16 %v766, %v765
    %v779 = vpack.c.b16 %v768, %v767
    %v780 = vpack.c.b16 %v770, %v769
    %v781 = vpack.c.b16 %v772, %v771
    %v782 = vpack.c.b16 %v774, %v773
    %791 = vmatprep.subr.bf16.mxu0 0
    %792 = vmatpush1.bf16.msra.mxu0 %v775
    %793 = vmatprep.subr.bf16.mxu0 0
    %794 = vmatpush1.bf16.msra.mxu0 %v776
    %795 = vmatprep.subr.bf16.mxu0 0
    %796 = vmatpush1.bf16.msra.mxu0 %v777
    %797 = vmatprep.subr.bf16.mxu0 0
    %798 = vmatpush1.bf16.msra.mxu0 %v778
    %799 = vmatprep.subr.bf16.mxu0 0
    %800 = vmatpush1.bf16.msra.mxu0 %v779
    %801 = vmatprep.subr.bf16.mxu0 0
    %802 = vmatpush1.bf16.msra.mxu0 %v780
    %803 = vmatprep.subr.bf16.mxu0 0
    %804 = vmatpush1.bf16.msra.mxu0 %v781
    %805 = vmatprep.subr.bf16.mxu0 0
    %806 = vmatpush1.bf16.msra.mxu0 %v782
    %807 = vmatprep.subr.bf16.mxu0 0
    %808 = vmatpush1.bf16.msra.mxu0 0
    %809 = vmatprep.subr.bf16.mxu0 0
    %810 = vmatpush1.bf16.msra.mxu0 0
    %811 = vmatprep.subr.bf16.mxu0 0
    %812 = vmatpush1.bf16.msra.mxu0 0
    %813 = vmatprep.subr.bf16.mxu0 0
    %814 = vmatpush1.bf16.msra.mxu0 0
    %815 = vmatprep.subr.bf16.mxu0 0
    %816 = vmatpush1.bf16.msra.mxu0 0
    %817 = vmatprep.subr.bf16.mxu0 0
    %818 = vmatpush1.bf16.msra.mxu0 0
    %819 = vmatprep.subr.bf16.mxu0 0
    %820 = vmatpush1.bf16.msra.mxu0 0
    %821 = vmatprep.subr.bf16.mxu0 0
    %822 = vmatpush1.bf16.msra.mxu0 0
    %823 = vmatprep.mubr.bf16.mxu0 0
    %824 = vmatmul.mubr.bf16.gmra.mrb[0].mxu0 %v711
    %v825 = vpop.f32.mrb[0].mxu0
    %v826 = vadd.f32 0.0, %v825
    %v827 = vpop.f32.mrb[0].mxu0
    %v828 = vpop.f32.mrb[0].mxu0
    %v829 = vadd.f32 0.0, %v828
    %v830 = vpop.f32.mrb[0].mxu0
    %831 = vmatprep.mubr.bf16.mxu0 0
    %832 = vmatmul.mubr.bf16.gmra.mrb[0].mxu0 %v712
    %v833 = vpop.f32.mrb[0].mxu0
    %v834 = vadd.f32 0.0, %v833
    %v835 = vpop.f32.mrb[0].mxu0
    %v836 = vpop.f32.mrb[0].mxu0
    %v837 = vadd.f32 0.0, %v836
    %v838 = vpop.f32.mrb[0].mxu0
    %839 = vmatprep.mubr.bf16.mxu0 0
    %840 = vmatmul.mubr.bf16.gmra.mrb[0].mxu0 %v713
    %v841 = vpop.f32.mrb[0].mxu0
    %v842 = vadd.f32 0.0, %v841
    %v843 = vpop.f32.mrb[0].mxu0
    %v844 = vpop.f32.mrb[0].mxu0
    %v845 = vadd.f32 0.0, %v844
    %v846 = vpop.f32.mrb[0].mxu0
    %847 = vmatprep.mubr.bf16.mxu0 0
    %848 = vmatmul.mubr.bf16.gmra.mrb[0].mxu0 %v714
    %v849 = vpop.f32.mrb[0].mxu0
    %v850 = vadd.f32 0.0, %v849
    %v851 = vpop.f32.mrb[0].mxu0
    %v852 = vpop.f32.mrb[0].mxu0
    %v853 = vadd.f32 0.0, %v852
    %v854 = vpop.f32.mrb[0].mxu0
    %855 = vmatprep.mubr.bf16.mxu0 0
    %856 = vmatmul.mubr.bf16.gmra.mrb[0].mxu0 %v715
    %v857 = vpop.f32.mrb[0].mxu0
    %v858 = vadd.f32 0.0, %v857
    %v859 = vpop.f32.mrb[0].mxu0
    %v860 = vpop.f32.mrb[0].mxu0
    %v861 = vadd.f32 0.0, %v860
    %v862 = vpop.f32.mrb[0].mxu0
    %863 = vmatprep.mubr.bf16.mxu0 0
    %864 = vmatmul.mubr.bf16.gmra.mrb[0].mxu0 %v716
    %v865 = vpop.f32.mrb[0].mxu0
    %v866 = vadd.f32 0.0, %v865
    %v867 = vpop.f32.mrb[0].mxu0
    %v868 = vpop.f32.mrb[0].mxu0
    %v869 = vadd.f32 0.0, %v868
    %v870 = vpop.f32.mrb[0].mxu0
    %871 = vmatprep.mubr.bf16.mxu0 0
    %872 = vmatmul.mubr.bf16.gmra.mrb[0].mxu0 %v717
    %v873 = vpop.f32.mrb[0].mxu0
    %v874 = vadd.f32 0.0, %v873
    %v875 = vpop.f32.mrb[0].mxu0
    %v876 = vpop.f32.mrb[0].mxu0
    %v877 = vadd.f32 0.0, %v876
    %v878 = vpop.f32.mrb[0].mxu0
    %879 = vmatprep.mubr.bf16.mxu0 0
    %880 = vmatmul.mubr.bf16.gmra.mrb[0].mxu0 %v718
    %v881 = vpop.f32.mrb[0].mxu0
    %v882 = vadd.f32 0.0, %v881
    %v883 = vpop.f32.mrb[0].mxu0
    %v884 = vpop.f32.mrb[0].mxu0
    %v885 = vadd.f32 0.0, %v884
    %v886 = vpop.f32.mrb[0].mxu0
    %887 = vmatprep.mubr.bf16.mxu0 0
    %888 = vmatmul.mubr.bf16.gmra.mrb[0].mxu0 %v719
    %v889 = vpop.f32.mrb[0].mxu0
    %v890 = vadd.f32 0.0, %v889
    %v891 = vpop.f32.mrb[0].mxu0
    %v892 = vpop.f32.mrb[0].mxu0
    %v893 = vadd.f32 0.0, %v892
    %v894 = vpop.f32.mrb[0].mxu0
    %895 = vmatprep.mubr.bf16.mxu0 0
    %896 = vmatmul.mubr.bf16.gmra.mrb[0].mxu0 %v720
    %v897 = vpop.f32.mrb[0].mxu0
    %v898 = vadd.f32 0.0, %v897
    %v899 = vpop.f32.mrb[0].mxu0
    %v900 = vpop.f32.mrb[0].mxu0
    %v901 = vadd.f32 0.0, %v900
    %v902 = vpop.f32.mrb[0].mxu0
    %903 = vmatprep.mubr.bf16.mxu0 0
    %904 = vmatmul.mubr.bf16.gmra.mrb[0].mxu0 %v721
    %v905 = vpop.f32.mrb[0].mxu0
    %v906 = vadd.f32 0.0, %v905
    %v907 = vpop.f32.mrb[0].mxu0
    %v908 = vpop.f32.mrb[0].mxu0
    %v909 = vadd.f32 0.0, %v908
    %v910 = vpop.f32.mrb[0].mxu0
    %911 = vmatprep.mubr.bf16.mxu0 0
    %912 = vmatmul.mubr.bf16.gmra.mrb[0].mxu0 %v722
    %v913 = vpop.f32.mrb[0].mxu0
    %v914 = vadd.f32 0.0, %v913
    %v915 = vpop.f32.mrb[0].mxu0
    %v916 = vpop.f32.mrb[0].mxu0
    %v917 = vadd.f32 0.0, %v916
    %v918 = vpop.f32.mrb[0].mxu0
    %919 = vmatprep.mubr.bf16.mxu0 0
    %920 = vmatmul.mubr.bf16.gmra.mrb[0].mxu0 %v723
    %v921 = vpop.f32.mrb[0].mxu0
    %v922 = vadd.f32 0.0, %v921
    %v923 = vpop.f32.mrb[0].mxu0
    %v924 = vpop.f32.mrb[0].mxu0
    %v925 = vadd.f32 0.0, %v924
    %v926 = vpop.f32.mrb[0].mxu0
    %927 = vmatprep.mubr.bf16.mxu0 0
    %928 = vmatmul.mubr.bf16.gmra.mrb[0].mxu0 %v724
    %v929 = vpop.f32.mrb[0].mxu0
    %v930 = vadd.f32 0.0, %v929
    %v931 = vpop.f32.mrb[0].mxu0
    %v932 = vpop.f32.mrb[0].mxu0
    %v933 = vadd.f32 0.0, %v932
    %v934 = vpop.f32.mrb[0].mxu0
    %935 = vmatprep.mubr.bf16.mxu0 0
    %936 = vmatmul.mubr.bf16.gmra.mrb[0].mxu0 %v725
    %v937 = vpop.f32.mrb[0].mxu0
    %v938 = vadd.f32 0.0, %v937
    %v939 = vpop.f32.mrb[0].mxu0
    %v940 = vpop.f32.mrb[0].mxu0
    %v941 = vadd.f32 0.0, %v940
    %v942 = vpop.f32.mrb[0].mxu0
    %943 = vmatprep.mubr.bf16.mxu0 0
    %944 = vmatmul.mubr.bf16.gmra.mrb[0].mxu0 %v726
    %v945 = vpop.f32.mrb[0].mxu0
    %v946 = vadd.f32 0.0, %v945
    %v947 = vpop.f32.mrb[0].mxu0
    %v948 = vpop.f32.mrb[0].mxu0
    %v949 = vadd.f32 0.0, %v948
    %v950 = vpop.f32.mrb[0].mxu0
    %951 = vdwg.mxu0
    %v952 = vadd.f32 %v679, %v826
    %v953 = vadd.f32 %v680, %v829
    %v954 = vadd.f32 %v681, %v834
    %v955 = vadd.f32 %v682, %v837
    %v956 = vadd.f32 %v683, %v842
    %v957 = vadd.f32 %v684, %v845
    %v958 = vadd.f32 %v685, %v850
    %v959 = vadd.f32 %v686, %v853
    %v960 = vadd.f32 %v687, %v858
    %v961 = vadd.f32 %v688, %v861
    %v962 = vadd.f32 %v689, %v866
    %v963 = vadd.f32 %v690, %v869
    %v964 = vadd.f32 %v691, %v874
    %v965 = vadd.f32 %v692, %v877
    %v966 = vadd.f32 %v693, %v882
    %v967 = vadd.f32 %v694, %v885
    %v968 = vadd.f32 %v695, %v890
    %v969 = vadd.f32 %v696, %v893
    %v970 = vadd.f32 %v697, %v898
    %v971 = vadd.f32 %v698, %v901
    %v972 = vadd.f32 %v699, %v906
    %v973 = vadd.f32 %v700, %v909
    %v974 = vadd.f32 %v701, %v914
    %v975 = vadd.f32 %v702, %v917
    %v976 = vadd.f32 %v703, %v922
    %v977 = vadd.f32 %v704, %v925
    %v978 = vadd.f32 %v705, %v930
    %v979 = vadd.f32 %v706, %v933
    %v980 = vadd.f32 %v707, %v938
    %v981 = vadd.f32 %v708, %v941
    %v982 = vadd.f32 %v709, %v946
    %v983 = vadd.f32 %v710, %v949
    %984 = vst [vmem:[#allocation2] sm:$0xff] %v952
    %985 = vst [vmem:[#allocation2 + $0x8] sm:$0xff] %v953
    %986 = vst [vmem:[#allocation2 + $0x10] sm:$0xff] %v954
    %987 = vst [vmem:[#allocation2 + $0x18] sm:$0xff] %v955
    %988 = vst [vmem:[#allocation2 + $0x20] sm:$0xff] %v956
    %989 = vst [vmem:[#allocation2 + $0x28] sm:$0xff] %v957
    %990 = vst [vmem:[#allocation2 + $0x30] sm:$0xff] %v958
    %991 = vst [vmem:[#allocation2 + $0x38] sm:$0xff] %v959
    %992 = vst [vmem:[#allocation2 + $0x40] sm:$0xff] %v960
    %993 = vst [vmem:[#allocation2 + $0x48] sm:$0xff] %v961
    %994 = vst [vmem:[#allocation2 + $0x50] sm:$0xff] %v962
    %995 = vst [vmem:[#allocation2 + $0x58] sm:$0xff] %v963
    %996 = vst [vmem:[#allocation2 + $0x60] sm:$0xff] %v964
    %997 = vst [vmem:[#allocation2 + $0x68] sm:$0xff] %v965
    %998 = vst [vmem:[#allocation2 + $0x70] sm:$0xff] %v966
    %999 = vst [vmem:[#allocation2 + $0x78] sm:$0xff] %v967
    %1000 = vst [vmem:[#allocation2 + $0x80] sm:$0xff] %v968
    %1001 = vst [vmem:[#allocation2 + $0x88] sm:$0xff] %v969
    %1002 = vst [vmem:[#allocation2 + $0x90] sm:$0xff] %v970
    %1003 = vst [vmem:[#allocation2 + $0x98] sm:$0xff] %v971
    %1004 = vst [vmem:[#allocation2 + $0xa0] sm:$0xff] %v972
    %1005 = vst [vmem:[#allocation2 + $0xa8] sm:$0xff] %v973
    %1006 = vst [vmem:[#allocation2 + $0xb0] sm:$0xff] %v974
    %1007 = vst [vmem:[#allocation2 + $0xb8] sm:$0xff] %v975
    %1008 = vst [vmem:[#allocation2 + $0xc0] sm:$0xff] %v976
    %1009 = vst [vmem:[#allocation2 + $0xc8] sm:$0xff] %v977
    %1010 = vst [vmem:[#allocation2 + $0xd0] sm:$0xff] %v978
    %1011 = vst [vmem:[#allocation2 + $0xd8] sm:$0xff] %v979
    %1012 = vst [vmem:[#allocation2 + $0xe0] sm:$0xff] %v980
    %1013 = vst [vmem:[#allocation2 + $0xe8] sm:$0xff] %v981
    %1014 = vst [vmem:[#allocation2 + $0xf0] sm:$0xff] %v982
    %1015 = vst [vmem:[#allocation2 + $0xf8] sm:$0xff] %v983
    %v1016 = vld [vmem:[#allocation6 + $0x4] sm:$0xf]
    %v1017 = vld [vmem:[#allocation6 + $0x10] sm:$0xf]
    %v1018 = vld [vmem:[#allocation6 + $0x1c] sm:$0xf]
    %v1019 = vld [vmem:[#allocation6 + $0x28] sm:$0xf]
    %v1020 = vld [vmem:[#allocation6 + $0x34] sm:$0xf]
    %v1021 = vld [vmem:[#allocation6 + $0x40] sm:$0xf]
    %v1022 = vld [vmem:[#allocation6 + $0x4c] sm:$0xf]
    %v1023 = vld [vmem:[#allocation6 + $0x58] sm:$0xf]
    %v1024 = vld [vmem:[#allocation6 + $0x64] sm:$0xf]
    %v1025 = vld [vmem:[#allocation6 + $0x70] sm:$0xf]
    %v1026 = vld [vmem:[#allocation6 + $0x7c] sm:$0xf]
    %v1027 = vld [vmem:[#allocation6 + $0x88] sm:$0xf]
    %v1028 = vld [vmem:[#allocation6 + $0x94] sm:$0xf]
    %v1029 = vld [vmem:[#allocation6 + $0xa0] sm:$0xf]
    %v1030 = vld [vmem:[#allocation6 + $0xac] sm:$0xf]
    %v1031 = vld [vmem:[#allocation6 + $0xb8] sm:$0xf]
    %v1032 = vld [vmem:[%s2 + $0x1] sm:$0x1]
    %v1034 = vlaneseq
    %v1035 = vshrl.u32 %v1034, 7
    %v1036 = vsub.s32 0, %v1035
    %v1037 = vrot.slane %v1032, %v1036
    %v1055 = vunpack.c.l.b16 %v1016
    %v1056 = vunpack.c.l.b16 %v1017
    %v1057 = vunpack.c.l.b16 %v1018
    %v1058 = vunpack.c.l.b16 %v1019
    %v1059 = vunpack.c.l.b16 %v1020
    %v1060 = vunpack.c.l.b16 %v1021
    %v1061 = vunpack.c.l.b16 %v1022
    %v1062 = vunpack.c.l.b16 %v1023
    %v1063 = vunpack.c.l.b16 %v1024
    %v1064 = vunpack.c.l.b16 %v1025
    %v1065 = vunpack.c.l.b16 %v1026
    %v1066 = vunpack.c.l.b16 %v1027
    %v1067 = vunpack.c.l.b16 %v1028
    %v1068 = vunpack.c.l.b16 %v1029
    %v1069 = vunpack.c.l.b16 %v1030
    %v1070 = vunpack.c.l.b16 %v1031
    %v1071 = vpack.c.b16 %v1056, %v1055
    %v1072 = vpack.c.b16 %v1058, %v1057
    %v1073 = vpack.c.b16 %v1060, %v1059
    %v1074 = vpack.c.b16 %v1062, %v1061
    %v1075 = vpack.c.b16 %v1064, %v1063
    %v1076 = vpack.c.b16 %v1066, %v1065
    %v1077 = vpack.c.b16 %v1068, %v1067
    %v1078 = vpack.c.b16 %v1070, %v1069
    %1087 = vmatprep.subr.bf16.mxu0 0
    %1088 = vmatpush1.bf16.msra.mxu0 %v1071
    %1089 = vmatprep.subr.bf16.mxu0 0
    %1090 = vmatpush1.bf16.msra.mxu0 %v1072
    %1091 = vmatprep.subr.bf16.mxu0 0
    %1092 = vmatpush1.bf16.msra.mxu0 %v1073
    %1093 = vmatprep.subr.bf16.mxu0 0
    %1094 = vmatpush1.bf16.msra.mxu0 %v1074
    %1095 = vmatprep.subr.bf16.mxu0 0
    %1096 = vmatpush1.bf16.msra.mxu0 %v1075
    %1097 = vmatprep.subr.bf16.mxu0 0
    %1098 = vmatpush1.bf16.msra.mxu0 %v1076
    %1099 = vmatprep.subr.bf16.mxu0 0
    %1100 = vmatpush1.bf16.msra.mxu0 %v1077
    %1101 = vmatprep.subr.bf16.mxu0 0
    %1102 = vmatpush1.bf16.msra.mxu0 %v1078
    %1103 = vmatprep.subr.bf16.mxu0 0
    %1104 = vmatpush1.bf16.msra.mxu0 0
    %1105 = vmatprep.subr.bf16.mxu0 0
    %1106 = vmatpush1.bf16.msra.mxu0 0
    %1107 = vmatprep.subr.bf16.mxu0 0
    %1108 = vmatpush1.bf16.msra.mxu0 0
    %1109 = vmatprep.subr.bf16.mxu0 0
    %1110 = vmatpush1.bf16.msra.mxu0 0
    %1111 = vmatprep.subr.bf16.mxu0 0
    %1112 = vmatpush1.bf16.msra.mxu0 0
    %1113 = vmatprep.subr.bf16.mxu0 0
    %1114 = vmatpush1.bf16.msra.mxu0 0
    %1115 = vmatprep.subr.bf16.mxu0 0
    %1116 = vmatpush1.bf16.msra.mxu0 0
    %1117 = vmatprep.subr.bf16.mxu0 0
    %1118 = vmatpush1.bf16.msra.mxu0 0
    %1119 = vmatprep.mubr.bf16.mxu0 0
    %1120 = vmatmul.mubr.bf16.gmra.mrb[0].mxu0 %v214
    %v1121 = vpop.f32.mrb[0].mxu0
    %v1122 = vadd.f32 %v1037, %v1121
    %v1123 = vpop.f32.mrb[0].mxu0
    %v1124 = vpop.f32.mrb[0].mxu0
    %v1125 = vadd.f32 %v1037, %v1124
    %v1126 = vpop.f32.mrb[0].mxu0
    %1127 = vmatprep.mubr.bf16.mxu0 0
    %1128 = vmatmul.mubr.bf16.gmra.mrb[0].mxu0 %v215
    %v1129 = vpop.f32.mrb[0].mxu0
    %v1130 = vadd.f32 %v1037, %v1129
    %v1131 = vpop.f32.mrb[0].mxu0
    %v1132 = vpop.f32.mrb[0].mxu0
    %v1133 = vadd.f32 %v1037, %v1132
    %v1134 = vpop.f32.mrb[0].mxu0
    %1135 = vmatprep.mubr.bf16.mxu0 0
    %1136 = vmatmul.mubr.bf16.gmra.mrb[0].mxu0 %v216
    %v1137 = vpop.f32.mrb[0].mxu0
    %v1138 = vadd.f32 %v1037, %v1137
    %v1139 = vpop.f32.mrb[0].mxu0
    %v1140 = vpop.f32.mrb[0].mxu0
    %v1141 = vadd.f32 %v1037, %v1140
    %v1142 = vpop.f32.mrb[0].mxu0
    %1143 = vmatprep.mubr.bf16.mxu0 0
    %1144 = vmatmul.mubr.bf16.gmra.mrb[0].mxu0 %v217
    %v1145 = vpop.f32.mrb[0].mxu0
    %v1146 = vadd.f32 %v1037, %v1145
    %v1147 = vpop.f32.mrb[0].mxu0
    %v1148 = vpop.f32.mrb[0].mxu0
    %v1149 = vadd.f32 %v1037, %v1148
    %v1150 = vpop.f32.mrb[0].mxu0
    %1151 = vmatprep.mubr.bf16.mxu0 0
    %1152 = vmatmul.mubr.bf16.gmra.mrb[0].mxu0 %v218
    %v1153 = vpop.f32.mrb[0].mxu0
    %v1154 = vadd.f32 %v1037, %v1153
    %v1155 = vpop.f32.mrb[0].mxu0
    %v1156 = vpop.f32.mrb[0].mxu0
    %v1157 = vadd.f32 %v1037, %v1156
    %v1158 = vpop.f32.mrb[0].mxu0
    %1159 = vmatprep.mubr.bf16.mxu0 0
    %1160 = vmatmul.mubr.bf16.gmra.mrb[0].mxu0 %v219
    %v1161 = vpop.f32.mrb[0].mxu0
    %v1162 = vadd.f32 %v1037, %v1161
    %v1163 = vpop.f32.mrb[0].mxu0
    %v1164 = vpop.f32.mrb[0].mxu0
    %v1165 = vadd.f32 %v1037, %v1164
    %v1166 = vpop.f32.mrb[0].mxu0
    %1167 = vmatprep.mubr.bf16.mxu0 0
    %1168 = vmatmul.mubr.bf16.gmra.mrb[0].mxu0 %v220
    %v1169 = vpop.f32.mrb[0].mxu0
    %v1170 = vadd.f32 %v1037, %v1169
    %v1171 = vpop.f32.mrb[0].mxu0
    %v1172 = vpop.f32.mrb[0].mxu0
    %v1173 = vadd.f32 %v1037, %v1172
    %v1174 = vpop.f32.mrb[0].mxu0
    %1175 = vmatprep.mubr.bf16.mxu0 0
    %1176 = vmatmul.mubr.bf16.gmra.mrb[0].mxu0 %v221
    %v1177 = vpop.f32.mrb[0].mxu0
    %v1178 = vadd.f32 %v1037, %v1177
    %v1179 = vpop.f32.mrb[0].mxu0
    %v1180 = vpop.f32.mrb[0].mxu0
    %v1181 = vadd.f32 %v1037, %v1180
    %v1182 = vpop.f32.mrb[0].mxu0
    %1183 = vmatprep.mubr.bf16.mxu0 0
    %1184 = vmatmul.mubr.bf16.gmra.mrb[0].mxu0 %v222
    %v1185 = vpop.f32.mrb[0].mxu0
    %v1186 = vadd.f32 %v1037, %v1185
    %v1187 = vpop.f32.mrb[0].mxu0
    %v1188 = vpop.f32.mrb[0].mxu0
    %v1189 = vadd.f32 %v1037, %v1188
    %v1190 = vpop.f32.mrb[0].mxu0
    %1191 = vmatprep.mubr.bf16.mxu0 0
    %1192 = vmatmul.mubr.bf16.gmra.mrb[0].mxu0 %v223
    %v1193 = vpop.f32.mrb[0].mxu0
    %v1194 = vadd.f32 %v1037, %v1193
    %v1195 = vpop.f32.mrb[0].mxu0
    %v1196 = vpop.f32.mrb[0].mxu0
    %v1197 = vadd.f32 %v1037, %v1196
    %v1198 = vpop.f32.mrb[0].mxu0
    %1199 = vmatprep.mubr.bf16.mxu0 0
    %1200 = vmatmul.mubr.bf16.gmra.mrb[0].mxu0 %v224
    %v1201 = vpop.f32.mrb[0].mxu0
    %v1202 = vadd.f32 %v1037, %v1201
    %v1203 = vpop.f32.mrb[0].mxu0
    %v1204 = vpop.f32.mrb[0].mxu0
    %v1205 = vadd.f32 %v1037, %v1204
    %v1206 = vpop.f32.mrb[0].mxu0
    %1207 = vmatprep.mubr.bf16.mxu0 0
    %1208 = vmatmul.mubr.bf16.gmra.mrb[0].mxu0 %v225
    %v1209 = vpop.f32.mrb[0].mxu0
    %v1210 = vadd.f32 %v1037, %v1209
    %v1211 = vpop.f32.mrb[0].mxu0
    %v1212 = vpop.f32.mrb[0].mxu0
    %v1213 = vadd.f32 %v1037, %v1212
    %v1214 = vpop.f32.mrb[0].mxu0
    %1215 = vmatprep.mubr.bf16.mxu0 0
    %1216 = vmatmul.mubr.bf16.gmra.mrb[0].mxu0 %v226
    %v1217 = vpop.f32.mrb[0].mxu0
    %v1218 = vadd.f32 %v1037, %v1217
    %v1219 = vpop.f32.mrb[0].mxu0
    %v1220 = vpop.f32.mrb[0].mxu0
    %v1221 = vadd.f32 %v1037, %v1220
    %v1222 = vpop.f32.mrb[0].mxu0
    %1223 = vmatprep.mubr.bf16.mxu0 0
    %1224 = vmatmul.mubr.bf16.gmra.mrb[0].mxu0 %v227
    %v1225 = vpop.f32.mrb[0].mxu0
    %v1226 = vadd.f32 %v1037, %v1225
    %v1227 = vpop.f32.mrb[0].mxu0
    %v1228 = vpop.f32.mrb[0].mxu0
    %v1229 = vadd.f32 %v1037, %v1228
    %v1230 = vpop.f32.mrb[0].mxu0
    %1231 = vmatprep.mubr.bf16.mxu0 0
    %1232 = vmatmul.mubr.bf16.gmra.mrb[0].mxu0 %v228
    %v1233 = vpop.f32.mrb[0].mxu0
    %v1234 = vadd.f32 %v1037, %v1233
    %v1235 = vpop.f32.mrb[0].mxu0
    %v1236 = vpop.f32.mrb[0].mxu0
    %v1237 = vadd.f32 %v1037, %v1236
    %v1238 = vpop.f32.mrb[0].mxu0
    %1239 = vmatprep.mubr.bf16.mxu0 0
    %1240 = vmatmul.mubr.bf16.gmra.mrb[0].mxu0 %v229
    %v1241 = vpop.f32.mrb[0].mxu0
    %v1242 = vadd.f32 %v1037, %v1241
    %v1243 = vpop.f32.mrb[0].mxu0
    %v1244 = vpop.f32.mrb[0].mxu0
    %v1245 = vadd.f32 %v1037, %v1244
    %v1246 = vpop.f32.mrb[0].mxu0
    %1247 = vdwg.mxu0
    %v1248 = vxor.u32 %v1122, 2147483648
    %v1249 = vxor.u32 %v1125, 2147483648
    %v1250 = vxor.u32 %v1130, 2147483648
    %v1251 = vxor.u32 %v1133, 2147483648
    %v1252 = vxor.u32 %v1138, 2147483648
    %v1253 = vxor.u32 %v1141, 2147483648
    %v1254 = vxor.u32 %v1146, 2147483648
    %v1255 = vxor.u32 %v1149, 2147483648
    %v1256 = vxor.u32 %v1154, 2147483648
    %v1257 = vxor.u32 %v1157, 2147483648
    %v1258 = vxor.u32 %v1162, 2147483648
    %v1259 = vxor.u32 %v1165, 2147483648
    %v1260 = vxor.u32 %v1170, 2147483648
    %v1261 = vxor.u32 %v1173, 2147483648
    %v1262 = vxor.u32 %v1178, 2147483648
    %v1263 = vxor.u32 %v1181, 2147483648
    %v1264 = vxor.u32 %v1186, 2147483648
    %v1265 = vxor.u32 %v1189, 2147483648
    %v1266 = vxor.u32 %v1194, 2147483648
    %v1267 = vxor.u32 %v1197, 2147483648
    %v1268 = vxor.u32 %v1202, 2147483648
    %v1269 = vxor.u32 %v1205, 2147483648
    %v1270 = vxor.u32 %v1210, 2147483648
    %v1271 = vxor.u32 %v1213, 2147483648
    %v1272 = vxor.u32 %v1218, 2147483648
    %v1273 = vxor.u32 %v1221, 2147483648
    %v1274 = vxor.u32 %v1226, 2147483648
    %v1275 = vxor.u32 %v1229, 2147483648
    %v1276 = vxor.u32 %v1234, 2147483648
    %v1277 = vxor.u32 %v1237, 2147483648
    %v1278 = vxor.u32 %v1242, 2147483648
    %v1279 = vxor.u32 %v1245, 2147483648
    %v1280 = vmul.f32 %v1248, 1.442695
    %v1281 = vpow.pop %v1280
    %v1282 = vmul.f32 %v1249, 1.442695
    %v1283 = vpow.pop %v1282
    %v1284 = vmul.f32 %v1250, 1.442695
    %v1285 = vpow.pop %v1284
    %v1286 = vmul.f32 %v1251, 1.442695
    %v1287 = vpow.pop %v1286
    %v1288 = vmul.f32 %v1252, 1.442695
    %v1289 = vpow.pop %v1288
    %v1290 = vmul.f32 %v1253, 1.442695
    %v1291 = vpow.pop %v1290
    %v1292 = vmul.f32 %v1254, 1.442695
    %v1293 = vpow.pop %v1292
    %v1294 = vmul.f32 %v1255, 1.442695
    %v1295 = vpow.pop %v1294
    %v1296 = vmul.f32 %v1256, 1.442695
    %v1297 = vpow.pop %v1296
    %v1298 = vmul.f32 %v1257, 1.442695
    %v1299 = vpow.pop %v1298
    %v1300 = vmul.f32 %v1258, 1.442695
    %v1301 = vpow.pop %v1300
    %v1302 = vmul.f32 %v1259, 1.442695
    %v1303 = vpow.pop %v1302
    %v1304 = vmul.f32 %v1260, 1.442695
    %v1305 = vpow.pop %v1304
    %v1306 = vmul.f32 %v1261, 1.442695
    %v1307 = vpow.pop %v1306
    %v1308 = vmul.f32 %v1262, 1.442695
    %v1309 = vpow.pop %v1308
    %v1310 = vmul.f32 %v1263, 1.442695
    %v1311 = vpow.pop %v1310
    %v1312 = vmul.f32 %v1264, 1.442695
    %v1313 = vpow.pop %v1312
    %v1314 = vmul.f32 %v1265, 1.442695
    %v1315 = vpow.pop %v1314
    %v1316 = vmul.f32 %v1266, 1.442695
    %v1317 = vpow.pop %v1316
    %v1318 = vmul.f32 %v1267, 1.442695
    %v1319 = vpow.pop %v1318
    %v1320 = vmul.f32 %v1268, 1.442695
    %v1321 = vpow.pop %v1320
    %v1322 = vmul.f32 %v1269, 1.442695
    %v1323 = vpow.pop %v1322
    %v1324 = vmul.f32 %v1270, 1.442695
    %v1325 = vpow.pop %v1324
    %v1326 = vmul.f32 %v1271, 1.442695
    %v1327 = vpow.pop %v1326
    %v1328 = vmul.f32 %v1272, 1.442695
    %v1329 = vpow.pop %v1328
    %v1330 = vmul.f32 %v1273, 1.442695
    %v1331 = vpow.pop %v1330
    %v1332 = vmul.f32 %v1274, 1.442695
    %v1333 = vpow.pop %v1332
    %v1334 = vmul.f32 %v1275, 1.442695
    %v1335 = vpow.pop %v1334
    %v1336 = vmul.f32 %v1276, 1.442695
    %v1337 = vpow.pop %v1336
    %v1338 = vmul.f32 %v1277, 1.442695
    %v1339 = vpow.pop %v1338
    %v1340 = vmul.f32 %v1278, 1.442695
    %v1341 = vpow.pop %v1340
    %v1342 = vmul.f32 %v1279, 1.442695
    %v1343 = vpow.pop %v1342
    %v1344 = vadd.f32 %v1281, 1.0
    %v1345 = vadd.f32 %v1283, 1.0
    %v1346 = vadd.f32 %v1285, 1.0
    %v1347 = vadd.f32 %v1287, 1.0
    %v1348 = vadd.f32 %v1289, 1.0
    %v1349 = vadd.f32 %v1291, 1.0
    %v1350 = vadd.f32 %v1293, 1.0
    %v1351 = vadd.f32 %v1295, 1.0
    %v1352 = vadd.f32 %v1297, 1.0
    %v1353 = vadd.f32 %v1299, 1.0
    %v1354 = vadd.f32 %v1301, 1.0
    %v1355 = vadd.f32 %v1303, 1.0
    %v1356 = vadd.f32 %v1305, 1.0
    %v1357 = vadd.f32 %v1307, 1.0
    %v1358 = vadd.f32 %v1309, 1.0
    %v1359 = vadd.f32 %v1311, 1.0
    %v1360 = vadd.f32 %v1313, 1.0
    %v1361 = vadd.f32 %v1315, 1.0
    %v1362 = vadd.f32 %v1317, 1.0
    %v1363 = vadd.f32 %v1319, 1.0
    %v1364 = vadd.f32 %v1321, 1.0
    %v1365 = vadd.f32 %v1323, 1.0
    %v1366 = vadd.f32 %v1325, 1.0
    %v1367 = vadd.f32 %v1327, 1.0
    %v1368 = vadd.f32 %v1329, 1.0
    %v1369 = vadd.f32 %v1331, 1.0
    %v1370 = vadd.f32 %v1333, 1.0
    %v1371 = vadd.f32 %v1335, 1.0
    %v1372 = vadd.f32 %v1337, 1.0
    %v1373 = vadd.f32 %v1339, 1.0
    %v1374 = vadd.f32 %v1341, 1.0
    %v1375 = vadd.f32 %v1343, 1.0
    %v1376 = vrcp.pop %v1344
    %v1377 = vmul.f32 1.0, %v1376
    %v1378 = vrcp.pop %v1345
    %v1379 = vmul.f32 1.0, %v1378
    %v1380 = vrcp.pop %v1346
    %v1381 = vmul.f32 1.0, %v1380
    %v1382 = vrcp.pop %v1347
    %v1383 = vmul.f32 1.0, %v1382
    %v1384 = vrcp.pop %v1348
    %v1385 = vmul.f32 1.0, %v1384
    %v1386 = vrcp.pop %v1349
    %v1387 = vmul.f32 1.0, %v1386
    %v1388 = vrcp.pop %v1350
    %v1389 = vmul.f32 1.0, %v1388
    %v1390 = vrcp.pop %v1351
    %v1391 = vmul.f32 1.0, %v1390
    %v1392 = vrcp.pop %v1352
    %v1393 = vmul.f32 1.0, %v1392
    %v1394 = vrcp.pop %v1353
    %v1395 = vmul.f32 1.0, %v1394
    %v1396 = vrcp.pop %v1354
    %v1397 = vmul.f32 1.0, %v1396
    %v1398 = vrcp.pop %v1355
    %v1399 = vmul.f32 1.0, %v1398
    %v1400 = vrcp.pop %v1356
    %v1401 = vmul.f32 1.0, %v1400
    %v1402 = vrcp.pop %v1357
    %v1403 = vmul.f32 1.0, %v1402
    %v1404 = vrcp.pop %v1358
    %v1405 = vmul.f32 1.0, %v1404
    %v1406 = vrcp.pop %v1359
    %v1407 = vmul.f32 1.0, %v1406
    %v1408 = vrcp.pop %v1360
    %v1409 = vmul.f32 1.0, %v1408
    %v1410 = vrcp.pop %v1361
    %v1411 = vmul.f32 1.0, %v1410
    %v1412 = vrcp.pop %v1362
    %v1413 = vmul.f32 1.0, %v1412
    %v1414 = vrcp.pop %v1363
    %v1415 = vmul.f32 1.0, %v1414
    %v1416 = vrcp.pop %v1364
    %v1417 = vmul.f32 1.0, %v1416
    %v1418 = vrcp.pop %v1365
    %v1419 = vmul.f32 1.0, %v1418
    %v1420 = vrcp.pop %v1366
    %v1421 = vmul.f32 1.0, %v1420
    %v1422 = vrcp.pop %v1367
    %v1423 = vmul.f32 1.0, %v1422
    %v1424 = vrcp.pop %v1368
    %v1425 = vmul.f32 1.0, %v1424
    %v1426 = vrcp.pop %v1369
    %v1427 = vmul.f32 1.0, %v1426
    %v1428 = vrcp.pop %v1370
    %v1429 = vmul.f32 1.0, %v1428
    %v1430 = vrcp.pop %v1371
    %v1431 = vmul.f32 1.0, %v1430
    %v1432 = vrcp.pop %v1372
    %v1433 = vmul.f32 1.0, %v1432
    %v1434 = vrcp.pop %v1373
    %v1435 = vmul.f32 1.0, %v1434
    %v1436 = vrcp.pop %v1374
    %v1437 = vmul.f32 1.0, %v1436
    %v1438 = vrcp.pop %v1375
    %v1439 = vmul.f32 1.0, %v1438
    %v1440 = vmul.f32 %v1122, %v1377
    %v1441 = vmul.f32 %v1125, %v1379
    %v1442 = vmul.f32 %v1130, %v1381
    %v1443 = vmul.f32 %v1133, %v1383
    %v1444 = vmul.f32 %v1138, %v1385
    %v1445 = vmul.f32 %v1141, %v1387
    %v1446 = vmul.f32 %v1146, %v1389
    %v1447 = vmul.f32 %v1149, %v1391
    %v1448 = vmul.f32 %v1154, %v1393
    %v1449 = vmul.f32 %v1157, %v1395
    %v1450 = vmul.f32 %v1162, %v1397
    %v1451 = vmul.f32 %v1165, %v1399
    %v1452 = vmul.f32 %v1170, %v1401
    %v1453 = vmul.f32 %v1173, %v1403
    %v1454 = vmul.f32 %v1178, %v1405
    %v1455 = vmul.f32 %v1181, %v1407
    %v1456 = vmul.f32 %v1186, %v1409
    %v1457 = vmul.f32 %v1189, %v1411
    %v1458 = vmul.f32 %v1194, %v1413
    %v1459 = vmul.f32 %v1197, %v1415
    %v1460 = vmul.f32 %v1202, %v1417
    %v1461 = vmul.f32 %v1205, %v1419
    %v1462 = vmul.f32 %v1210, %v1421
    %v1463 = vmul.f32 %v1213, %v1423
    %v1464 = vmul.f32 %v1218, %v1425
    %v1465 = vmul.f32 %v1221, %v1427
    %v1466 = vmul.f32 %v1226, %v1429
    %v1467 = vmul.f32 %v1229, %v1431
    %v1468 = vmul.f32 %v1234, %v1433
    %v1469 = vmul.f32 %v1237, %v1435
    %v1470 = vmul.f32 %v1242, %v1437
    %v1471 = vmul.f32 %v1245, %v1439
    %v1472 = vld [vmem:[#allocation2] sm:$0xff]
    %v1473 = vld [vmem:[#allocation2 + $0x8] sm:$0xff]
    %v1474 = vld [vmem:[#allocation2 + $0x10] sm:$0xff]
    %v1475 = vld [vmem:[#allocation2 + $0x18] sm:$0xff]
    %v1476 = vld [vmem:[#allocation2 + $0x20] sm:$0xff]
    %v1477 = vld [vmem:[#allocation2 + $0x28] sm:$0xff]
    %v1478 = vld [vmem:[#allocation2 + $0x30] sm:$0xff]
    %v1479 = vld [vmem:[#allocation2 + $0x38] sm:$0xff]
    %v1480 = vld [vmem:[#allocation2 + $0x40] sm:$0xff]
    %v1481 = vld [vmem:[#allocation2 + $0x48] sm:$0xff]
    %v1482 = vld [vmem:[#allocation2 + $0x50] sm:$0xff]
    %v1483 = vld [vmem:[#allocation2 + $0x58] sm:$0xff]
    %v1484 = vld [vmem:[#allocation2 + $0x60] sm:$0xff]
    %v1485 = vld [vmem:[#allocation2 + $0x68] sm:$0xff]
    %v1486 = vld [vmem:[#allocation2 + $0x70] sm:$0xff]
    %v1487 = vld [vmem:[#allocation2 + $0x78] sm:$0xff]
    %v1488 = vld [vmem:[#allocation2 + $0x80] sm:$0xff]
    %v1489 = vld [vmem:[#allocation2 + $0x88] sm:$0xff]
    %v1490 = vld [vmem:[#allocation2 + $0x90] sm:$0xff]
    %v1491 = vld [vmem:[#allocation2 + $0x98] sm:$0xff]
    %v1492 = vld [vmem:[#allocation2 + $0xa0] sm:$0xff]
    %v1493 = vld [vmem:[#allocation2 + $0xa8] sm:$0xff]
    %v1494 = vld [vmem:[#allocation2 + $0xb0] sm:$0xff]
    %v1495 = vld [vmem:[#allocation2 + $0xb8] sm:$0xff]
    %v1496 = vld [vmem:[#allocation2 + $0xc0] sm:$0xff]
    %v1497 = vld [vmem:[#allocation2 + $0xc8] sm:$0xff]
    %v1498 = vld [vmem:[#allocation2 + $0xd0] sm:$0xff]
    %v1499 = vld [vmem:[#allocation2 + $0xd8] sm:$0xff]
    %v1500 = vld [vmem:[#allocation2 + $0xe0] sm:$0xff]
    %v1501 = vld [vmem:[#allocation2 + $0xe8] sm:$0xff]
    %v1502 = vld [vmem:[#allocation2 + $0xf0] sm:$0xff]
    %v1503 = vld [vmem:[#allocation2 + $0xf8] sm:$0xff]
    %v1504 = vpack.c.bf16 %v1441, %v1440
    %v1505 = vpack.c.bf16 %v1443, %v1442
    %v1506 = vpack.c.bf16 %v1445, %v1444
    %v1507 = vpack.c.bf16 %v1447, %v1446
    %v1508 = vpack.c.bf16 %v1449, %v1448
    %v1509 = vpack.c.bf16 %v1451, %v1450
    %v1510 = vpack.c.bf16 %v1453, %v1452
    %v1511 = vpack.c.bf16 %v1455, %v1454
    %v1512 = vpack.c.bf16 %v1457, %v1456
    %v1513 = vpack.c.bf16 %v1459, %v1458
    %v1514 = vpack.c.bf16 %v1461, %v1460
    %v1515 = vpack.c.bf16 %v1463, %v1462
    %v1516 = vpack.c.bf16 %v1465, %v1464
    %v1517 = vpack.c.bf16 %v1467, %v1466
    %v1518 = vpack.c.bf16 %v1469, %v1468
    %v1519 = vpack.c.bf16 %v1471, %v1470
    %v1520 = vld [vmem:[#allocation8 + $0x40] sm:$0xf]
    %v1521 = vld [vmem:[#allocation8 + $0x44] sm:$0xf]
    %v1522 = vld [vmem:[#allocation8 + $0x48] sm:$0xf]
    %v1523 = vld [vmem:[#allocation8 + $0x4c] sm:$0xf]
    %v1524 = vld [vmem:[#allocation8 + $0x50] sm:$0xf]
    %v1525 = vld [vmem:[#allocation8 + $0x54] sm:$0xf]
    %v1526 = vld [vmem:[#allocation8 + $0x58] sm:$0xf]
    %v1527 = vld [vmem:[#allocation8 + $0x5c] sm:$0xf]
    %v1528 = vld [vmem:[#allocation8 + $0x60] sm:$0xf]
    %v1529 = vld [vmem:[#allocation8 + $0x64] sm:$0xf]
    %v1530 = vld [vmem:[#allocation8 + $0x68] sm:$0xf]
    %v1531 = vld [vmem:[#allocation8 + $0x6c] sm:$0xf]
    %v1532 = vld [vmem:[#allocation8 + $0x70] sm:$0xf]
    %v1533 = vld [vmem:[#allocation8 + $0x74] sm:$0xf]
    %v1534 = vld [vmem:[#allocation8 + $0x78] sm:$0xf]
    %v1535 = vld [vmem:[#allocation8 + $0x7c] sm:$0xf]
    %v1552 = vunpack.c.l.b16 %v1520
    %v1553 = vunpack.c.l.b16 %v1521
    %v1554 = vunpack.c.l.b16 %v1522
    %v1555 = vunpack.c.l.b16 %v1523
    %v1556 = vunpack.c.l.b16 %v1524
    %v1557 = vunpack.c.l.b16 %v1525
    %v1558 = vunpack.c.l.b16 %v1526
    %v1559 = vunpack.c.l.b16 %v1527
    %v1560 = vunpack.c.l.b16 %v1528
    %v1561 = vunpack.c.l.b16 %v1529
    %v1562 = vunpack.c.l.b16 %v1530
    %v1563 = vunpack.c.l.b16 %v1531
    %v1564 = vunpack.c.l.b16 %v1532
    %v1565 = vunpack.c.l.b16 %v1533
    %v1566 = vunpack.c.l.b16 %v1534
    %v1567 = vunpack.c.l.b16 %v1535
    %v1568 = vpack.c.b16 %v1553, %v1552
    %v1569 = vpack.c.b16 %v1555, %v1554
    %v1570 = vpack.c.b16 %v1557, %v1556
    %v1571 = vpack.c.b16 %v1559, %v1558
    %v1572 = vpack.c.b16 %v1561, %v1560
    %v1573 = vpack.c.b16 %v1563, %v1562
    %v1574 = vpack.c.b16 %v1565, %v1564
    %v1575 = vpack.c.b16 %v1567, %v1566
    %1584 = vmatprep.subr.bf16.mxu0 0
    %1585 = vmatpush1.bf16.msra.mxu0 %v1568
    %1586 = vmatprep.subr.bf16.mxu0 0
    %1587 = vmatpush1.bf16.msra.mxu0 %v1569
    %1588 = vmatprep.subr.bf16.mxu0 0
    %1589 = vmatpush1.bf16.msra.mxu0 %v1570
    %1590 = vmatprep.subr.bf16.mxu0 0
    %1591 = vmatpush1.bf16.msra.mxu0 %v1571
    %1592 = vmatprep.subr.bf16.mxu0 0
    %1593 = vmatpush1.bf16.msra.mxu0 %v1572
    %1594 = vmatprep.subr.bf16.mxu0 0
    %1595 = vmatpush1.bf16.msra.mxu0 %v1573
    %1596 = vmatprep.subr.bf16.mxu0 0
    %1597 = vmatpush1.bf16.msra.mxu0 %v1574
    %1598 = vmatprep.subr.bf16.mxu0 0
    %1599 = vmatpush1.bf16.msra.mxu0 %v1575
    %1600 = vmatprep.subr.bf16.mxu0 0
    %1601 = vmatpush1.bf16.msra.mxu0 0
    %1602 = vmatprep.subr.bf16.mxu0 0
    %1603 = vmatpush1.bf16.msra.mxu0 0
    %1604 = vmatprep.subr.bf16.mxu0 0
    %1605 = vmatpush1.bf16.msra.mxu0 0
    %1606 = vmatprep.subr.bf16.mxu0 0
    %1607 = vmatpush1.bf16.msra.mxu0 0
    %1608 = vmatprep.subr.bf16.mxu0 0
    %1609 = vmatpush1.bf16.msra.mxu0 0
    %1610 = vmatprep.subr.bf16.mxu0 0
    %1611 = vmatpush1.bf16.msra.mxu0 0
    %1612 = vmatprep.subr.bf16.mxu0 0
    %1613 = vmatpush1.bf16.msra.mxu0 0
    %1614 = vmatprep.subr.bf16.mxu0 0
    %1615 = vmatpush1.bf16.msra.mxu0 0
    %1616 = vmatprep.mubr.bf16.mxu0 0
    %1617 = vmatmul.mubr.bf16.gmra.mrb[0].mxu0 %v1504
    %v1618 = vpop.f32.mrb[0].mxu0
    %v1619 = vadd.f32 0.0, %v1618
    %v1620 = vpop.f32.mrb[0].mxu0
    %v1621 = vpop.f32.mrb[0].mxu0
    %v1622 = vadd.f32 0.0, %v1621
    %v1623 = vpop.f32.mrb[0].mxu0
    %1624 = vmatprep.mubr.bf16.mxu0 0
    %1625 = vmatmul.mubr.bf16.gmra.mrb[0].mxu0 %v1505
    %v1626 = vpop.f32.mrb[0].mxu0
    %v1627 = vadd.f32 0.0, %v1626
    %v1628 = vpop.f32.mrb[0].mxu0
    %v1629 = vpop.f32.mrb[0].mxu0
    %v1630 = vadd.f32 0.0, %v1629
    %v1631 = vpop.f32.mrb[0].mxu0
    %1632 = vmatprep.mubr.bf16.mxu0 0
    %1633 = vmatmul.mubr.bf16.gmra.mrb[0].mxu0 %v1506
    %v1634 = vpop.f32.mrb[0].mxu0
    %v1635 = vadd.f32 0.0, %v1634
    %v1636 = vpop.f32.mrb[0].mxu0
    %v1637 = vpop.f32.mrb[0].mxu0
    %v1638 = vadd.f32 0.0, %v1637
    %v1639 = vpop.f32.mrb[0].mxu0
    %1640 = vmatprep.mubr.bf16.mxu0 0
    %1641 = vmatmul.mubr.bf16.gmra.mrb[0].mxu0 %v1507
    %v1642 = vpop.f32.mrb[0].mxu0
    %v1643 = vadd.f32 0.0, %v1642
    %v1644 = vpop.f32.mrb[0].mxu0
    %v1645 = vpop.f32.mrb[0].mxu0
    %v1646 = vadd.f32 0.0, %v1645
    %v1647 = vpop.f32.mrb[0].mxu0
    %1648 = vmatprep.mubr.bf16.mxu0 0
    %1649 = vmatmul.mubr.bf16.gmra.mrb[0].mxu0 %v1508
    %v1650 = vpop.f32.mrb[0].mxu0
    %v1651 = vadd.f32 0.0, %v1650
    %v1652 = vpop.f32.mrb[0].mxu0
    %v1653 = vpop.f32.mrb[0].mxu0
    %v1654 = vadd.f32 0.0, %v1653
    %v1655 = vpop.f32.mrb[0].mxu0
    %1656 = vmatprep.mubr.bf16.mxu0 0
    %1657 = vmatmul.mubr.bf16.gmra.mrb[0].mxu0 %v1509
    %v1658 = vpop.f32.mrb[0].mxu0
    %v1659 = vadd.f32 0.0, %v1658
    %v1660 = vpop.f32.mrb[0].mxu0
    %v1661 = vpop.f32.mrb[0].mxu0
    %v1662 = vadd.f32 0.0, %v1661
    %v1663 = vpop.f32.mrb[0].mxu0
    %1664 = vmatprep.mubr.bf16.mxu0 0
    %1665 = vmatmul.mubr.bf16.gmra.mrb[0].mxu0 %v1510
    %v1666 = vpop.f32.mrb[0].mxu0
    %v1667 = vadd.f32 0.0, %v1666
    %v1668 = vpop.f32.mrb[0].mxu0
    %v1669 = vpop.f32.mrb[0].mxu0
    %v1670 = vadd.f32 0.0, %v1669
    %v1671 = vpop.f32.mrb[0].mxu0
    %1672 = vmatprep.mubr.bf16.mxu0 0
    %1673 = vmatmul.mubr.bf16.gmra.mrb[0].mxu0 %v1511
    %v1674 = vpop.f32.mrb[0].mxu0
    %v1675 = vadd.f32 0.0, %v1674
    %v1676 = vpop.f32.mrb[0].mxu0
    %v1677 = vpop.f32.mrb[0].mxu0
    %v1678 = vadd.f32 0.0, %v1677
    %v1679 = vpop.f32.mrb[0].mxu0
    %1680 = vmatprep.mubr.bf16.mxu0 0
    %1681 = vmatmul.mubr.bf16.gmra.mrb[0].mxu0 %v1512
    %v1682 = vpop.f32.mrb[0].mxu0
    %v1683 = vadd.f32 0.0, %v1682
    %v1684 = vpop.f32.mrb[0].mxu0
    %v1685 = vpop.f32.mrb[0].mxu0
    %v1686 = vadd.f32 0.0, %v1685
    %v1687 = vpop.f32.mrb[0].mxu0
    %1688 = vmatprep.mubr.bf16.mxu0 0
    %1689 = vmatmul.mubr.bf16.gmra.mrb[0].mxu0 %v1513
    %v1690 = vpop.f32.mrb[0].mxu0
    %v1691 = vadd.f32 0.0, %v1690
    %v1692 = vpop.f32.mrb[0].mxu0
    %v1693 = vpop.f32.mrb[0].mxu0
    %v1694 = vadd.f32 0.0, %v1693
    %v1695 = vpop.f32.mrb[0].mxu0
    %1696 = vmatprep.mubr.bf16.mxu0 0
    %1697 = vmatmul.mubr.bf16.gmra.mrb[0].mxu0 %v1514
    %v1698 = vpop.f32.mrb[0].mxu0
    %v1699 = vadd.f32 0.0, %v1698
    %v1700 = vpop.f32.mrb[0].mxu0
    %v1701 = vpop.f32.mrb[0].mxu0
    %v1702 = vadd.f32 0.0, %v1701
    %v1703 = vpop.f32.mrb[0].mxu0
    %1704 = vmatprep.mubr.bf16.mxu0 0
    %1705 = vmatmul.mubr.bf16.gmra.mrb[0].mxu0 %v1515
    %v1706 = vpop.f32.mrb[0].mxu0
    %v1707 = vadd.f32 0.0, %v1706
    %v1708 = vpop.f32.mrb[0].mxu0
    %v1709 = vpop.f32.mrb[0].mxu0
    %v1710 = vadd.f32 0.0, %v1709
    %v1711 = vpop.f32.mrb[0].mxu0
    %1712 = vmatprep.mubr.bf16.mxu0 0
    %1713 = vmatmul.mubr.bf16.gmra.mrb[0].mxu0 %v1516
    %v1714 = vpop.f32.mrb[0].mxu0
    %v1715 = vadd.f32 0.0, %v1714
    %v1716 = vpop.f32.mrb[0].mxu0
    %v1717 = vpop.f32.mrb[0].mxu0
    %v1718 = vadd.f32 0.0, %v1717
    %v1719 = vpop.f32.mrb[0].mxu0
    %1720 = vmatprep.mubr.bf16.mxu0 0
    %1721 = vmatmul.mubr.bf16.gmra.mrb[0].mxu0 %v1517
    %v1722 = vpop.f32.mrb[0].mxu0
    %v1723 = vadd.f32 0.0, %v1722
    %v1724 = vpop.f32.mrb[0].mxu0
    %v1725 = vpop.f32.mrb[0].mxu0
    %v1726 = vadd.f32 0.0, %v1725
    %v1727 = vpop.f32.mrb[0].mxu0
    %1728 = vmatprep.mubr.bf16.mxu0 0
    %1729 = vmatmul.mubr.bf16.gmra.mrb[0].mxu0 %v1518
    %v1730 = vpop.f32.mrb[0].mxu0
    %v1731 = vadd.f32 0.0, %v1730
    %v1732 = vpop.f32.mrb[0].mxu0
    %v1733 = vpop.f32.mrb[0].mxu0
    %v1734 = vadd.f32 0.0, %v1733
    %v1735 = vpop.f32.mrb[0].mxu0
    %1736 = vmatprep.mubr.bf16.mxu0 0
    %1737 = vmatmul.mubr.bf16.gmra.mrb[0].mxu0 %v1519
    %v1738 = vpop.f32.mrb[0].mxu0
    %v1739 = vadd.f32 0.0, %v1738
    %v1740 = vpop.f32.mrb[0].mxu0
    %v1741 = vpop.f32.mrb[0].mxu0
    %v1742 = vadd.f32 0.0, %v1741
    %v1743 = vpop.f32.mrb[0].mxu0
    %1744 = vdwg.mxu0
    %v1745 = vadd.f32 %v1472, %v1619
    %v1746 = vadd.f32 %v1473, %v1622
    %v1747 = vadd.f32 %v1474, %v1627
    %v1748 = vadd.f32 %v1475, %v1630
    %v1749 = vadd.f32 %v1476, %v1635
    %v1750 = vadd.f32 %v1477, %v1638
    %v1751 = vadd.f32 %v1478, %v1643
    %v1752 = vadd.f32 %v1479, %v1646
    %v1753 = vadd.f32 %v1480, %v1651
    %v1754 = vadd.f32 %v1481, %v1654
    %v1755 = vadd.f32 %v1482, %v1659
    %v1756 = vadd.f32 %v1483, %v1662
    %v1757 = vadd.f32 %v1484, %v1667
    %v1758 = vadd.f32 %v1485, %v1670
    %v1759 = vadd.f32 %v1486, %v1675
    %v1760 = vadd.f32 %v1487, %v1678
    %v1761 = vadd.f32 %v1488, %v1683
    %v1762 = vadd.f32 %v1489, %v1686
    %v1763 = vadd.f32 %v1490, %v1691
    %v1764 = vadd.f32 %v1491, %v1694
    %v1765 = vadd.f32 %v1492, %v1699
    %v1766 = vadd.f32 %v1493, %v1702
    %v1767 = vadd.f32 %v1494, %v1707
    %v1768 = vadd.f32 %v1495, %v1710
    %v1769 = vadd.f32 %v1496, %v1715
    %v1770 = vadd.f32 %v1497, %v1718
    %v1771 = vadd.f32 %v1498, %v1723
    %v1772 = vadd.f32 %v1499, %v1726
    %v1773 = vadd.f32 %v1500, %v1731
    %v1774 = vadd.f32 %v1501, %v1734
    %v1775 = vadd.f32 %v1502, %v1739
    %v1776 = vadd.f32 %v1503, %v1742
    %1777 = vst [vmem:[#allocation2] sm:$0xff] %v1745
    %1778 = vst [vmem:[#allocation2 + $0x8] sm:$0xff] %v1746
    %1779 = vst [vmem:[#allocation2 + $0x10] sm:$0xff] %v1747
    %1780 = vst [vmem:[#allocation2 + $0x18] sm:$0xff] %v1748
    %1781 = vst [vmem:[#allocation2 + $0x20] sm:$0xff] %v1749
    %1782 = vst [vmem:[#allocation2 + $0x28] sm:$0xff] %v1750
    %1783 = vst [vmem:[#allocation2 + $0x30] sm:$0xff] %v1751
    %1784 = vst [vmem:[#allocation2 + $0x38] sm:$0xff] %v1752
    %1785 = vst [vmem:[#allocation2 + $0x40] sm:$0xff] %v1753
    %1786 = vst [vmem:[#allocation2 + $0x48] sm:$0xff] %v1754
    %1787 = vst [vmem:[#allocation2 + $0x50] sm:$0xff] %v1755
    %1788 = vst [vmem:[#allocation2 + $0x58] sm:$0xff] %v1756
    %1789 = vst [vmem:[#allocation2 + $0x60] sm:$0xff] %v1757
    %1790 = vst [vmem:[#allocation2 + $0x68] sm:$0xff] %v1758
    %1791 = vst [vmem:[#allocation2 + $0x70] sm:$0xff] %v1759
    %1792 = vst [vmem:[#allocation2 + $0x78] sm:$0xff] %v1760
    %1793 = vst [vmem:[#allocation2 + $0x80] sm:$0xff] %v1761
    %1794 = vst [vmem:[#allocation2 + $0x88] sm:$0xff] %v1762
    %1795 = vst [vmem:[#allocation2 + $0x90] sm:$0xff] %v1763
    %1796 = vst [vmem:[#allocation2 + $0x98] sm:$0xff] %v1764
    %1797 = vst [vmem:[#allocation2 + $0xa0] sm:$0xff] %v1765
    %1798 = vst [vmem:[#allocation2 + $0xa8] sm:$0xff] %v1766
    %1799 = vst [vmem:[#allocation2 + $0xb0] sm:$0xff] %v1767
    %1800 = vst [vmem:[#allocation2 + $0xb8] sm:$0xff] %v1768
    %1801 = vst [vmem:[#allocation2 + $0xc0] sm:$0xff] %v1769
    %1802 = vst [vmem:[#allocation2 + $0xc8] sm:$0xff] %v1770
    %1803 = vst [vmem:[#allocation2 + $0xd0] sm:$0xff] %v1771
    %1804 = vst [vmem:[#allocation2 + $0xd8] sm:$0xff] %v1772
    %1805 = vst [vmem:[#allocation2 + $0xe0] sm:$0xff] %v1773
    %1806 = vst [vmem:[#allocation2 + $0xe8] sm:$0xff] %v1774
    %1807 = vst [vmem:[#allocation2 + $0xf0] sm:$0xff] %v1775
    %1808 = vst [vmem:[#allocation2 + $0xf8] sm:$0xff] %v1776
    %v1809 = vld [vmem:[#allocation6 + $0x8] sm:$0xf]
    %v1810 = vld [vmem:[#allocation6 + $0x14] sm:$0xf]
    %v1811 = vld [vmem:[#allocation6 + $0x20] sm:$0xf]
    %v1812 = vld [vmem:[#allocation6 + $0x2c] sm:$0xf]
    %v1813 = vld [vmem:[#allocation6 + $0x38] sm:$0xf]
    %v1814 = vld [vmem:[#allocation6 + $0x44] sm:$0xf]
    %v1815 = vld [vmem:[#allocation6 + $0x50] sm:$0xf]
    %v1816 = vld [vmem:[#allocation6 + $0x5c] sm:$0xf]
    %v1817 = vld [vmem:[#allocation6 + $0x68] sm:$0xf]
    %v1818 = vld [vmem:[#allocation6 + $0x74] sm:$0xf]
    %v1819 = vld [vmem:[#allocation6 + $0x80] sm:$0xf]
    %v1820 = vld [vmem:[#allocation6 + $0x8c] sm:$0xf]
    %v1821 = vld [vmem:[#allocation6 + $0x98] sm:$0xf]
    %v1822 = vld [vmem:[#allocation6 + $0xa4] sm:$0xf]
    %v1823 = vld [vmem:[#allocation6 + $0xb0] sm:$0xf]
    %v1824 = vld [vmem:[#allocation6 + $0xbc] sm:$0xf]
    %v1825 = vld [vmem:[%s2 + $0x2] sm:$0x1]
    %v1827 = vlaneseq
    %v1828 = vshrl.u32 %v1827, 7
    %v1829 = vsub.s32 0, %v1828
    %v1830 = vrot.slane %v1825, %v1829
    %v1848 = vunpack.c.l.b16 %v1809
    %v1849 = vunpack.c.l.b16 %v1810
    %v1850 = vunpack.c.l.b16 %v1811
    %v1851 = vunpack.c.l.b16 %v1812
    %v1852 = vunpack.c.l.b16 %v1813
    %v1853 = vunpack.c.l.b16 %v1814
    %v1854 = vunpack.c.l.b16 %v1815
    %v1855 = vunpack.c.l.b16 %v1816
    %v1856 = vunpack.c.l.b16 %v1817
    %v1857 = vunpack.c.l.b16 %v1818
    %v1858 = vunpack.c.l.b16 %v1819
    %v1859 = vunpack.c.l.b16 %v1820
    %v1860 = vunpack.c.l.b16 %v1821
    %v1861 = vunpack.c.l.b16 %v1822
    %v1862 = vunpack.c.l.b16 %v1823
    %v1863 = vunpack.c.l.b16 %v1824
    %v1864 = vpack.c.b16 %v1849, %v1848
    %v1865 = vpack.c.b16 %v1851, %v1850
    %v1866 = vpack.c.b16 %v1853, %v1852
    %v1867 = vpack.c.b16 %v1855, %v1854
    %v1868 = vpack.c.b16 %v1857, %v1856
    %v1869 = vpack.c.b16 %v1859, %v1858
    %v1870 = vpack.c.b16 %v1861, %v1860
    %v1871 = vpack.c.b16 %v1863, %v1862
    %1880 = vmatprep.subr.bf16.mxu0 0
    %1881 = vmatpush1.bf16.msra.mxu0 %v1864
    %1882 = vmatprep.subr.bf16.mxu0 0
    %1883 = vmatpush1.bf16.msra.mxu0 %v1865
    %1884 = vmatprep.subr.bf16.mxu0 0
    %1885 = vmatpush1.bf16.msra.mxu0 %v1866
    %1886 = vmatprep.subr.bf16.mxu0 0
    %1887 = vmatpush1.bf16.msra.mxu0 %v1867
    %1888 = vmatprep.subr.bf16.mxu0 0
    %1889 = vmatpush1.bf16.msra.mxu0 %v1868
    %1890 = vmatprep.subr.bf16.mxu0 0
    %1891 = vmatpush1.bf16.msra.mxu0 %v1869
    %1892 = vmatprep.subr.bf16.mxu0 0
    %1893 = vmatpush1.bf16.msra.mxu0 %v1870
    %1894 = vmatprep.subr.bf16.mxu0 0
    %1895 = vmatpush1.bf16.msra.mxu0 %v1871
    %1896 = vmatprep.subr.bf16.mxu0 0
    %1897 = vmatpush1.bf16.msra.mxu0 0
    %1898 = vmatprep.subr.bf16.mxu0 0
    %1899 = vmatpush1.bf16.msra.mxu0 0
    %1900 = vmatprep.subr.bf16.mxu0 0
    %1901 = vmatpush1.bf16.msra.mxu0 0
    %1902 = vmatprep.subr.bf16.mxu0 0
    %1903 = vmatpush1.bf16.msra.mxu0 0
    %1904 = vmatprep.subr.bf16.mxu0 0
    %1905 = vmatpush1.bf16.msra.mxu0 0
    %1906 = vmatprep.subr.bf16.mxu0 0
    %1907 = vmatpush1.bf16.msra.mxu0 0
    %1908 = vmatprep.subr.bf16.mxu0 0
    %1909 = vmatpush1.bf16.msra.mxu0 0
    %1910 = vmatprep.subr.bf16.mxu0 0
    %1911 = vmatpush1.bf16.msra.mxu0 0
    %1912 = vmatprep.mubr.bf16.mxu0 0
    %1913 = vmatmul.mubr.bf16.gmra.mrb[0].mxu0 %v214
    %v1914 = vpop.f32.mrb[0].mxu0
    %v1915 = vadd.f32 %v1830, %v1914
    %v1916 = vpop.f32.mrb[0].mxu0
    %v1917 = vpop.f32.mrb[0].mxu0
    %v1918 = vadd.f32 %v1830, %v1917
    %v1919 = vpop.f32.mrb[0].mxu0
    %1920 = vmatprep.mubr.bf16.mxu0 0
    %1921 = vmatmul.mubr.bf16.gmra.mrb[0].mxu0 %v215
    %v1922 = vpop.f32.mrb[0].mxu0
    %v1923 = vadd.f32 %v1830, %v1922
    %v1924 = vpop.f32.mrb[0].mxu0
    %v1925 = vpop.f32.mrb[0].mxu0
    %v1926 = vadd.f32 %v1830, %v1925
    %v1927 = vpop.f32.mrb[0].mxu0
    %1928 = vmatprep.mubr.bf16.mxu0 0
    %1929 = vmatmul.mubr.bf16.gmra.mrb[0].mxu0 %v216
    %v1930 = vpop.f32.mrb[0].mxu0
    %v1931 = vadd.f32 %v1830, %v1930
    %v1932 = vpop.f32.mrb[0].mxu0
    %v1933 = vpop.f32.mrb[0].mxu0
    %v1934 = vadd.f32 %v1830, %v1933
    %v1935 = vpop.f32.mrb[0].mxu0
    %1936 = vmatprep.mubr.bf16.mxu0 0
    %1937 = vmatmul.mubr.bf16.gmra.mrb[0].mxu0 %v217
    %v1938 = vpop.f32.mrb[0].mxu0
    %v1939 = vadd.f32 %v1830, %v1938
    %v1940 = vpop.f32.mrb[0].mxu0
    %v1941 = vpop.f32.mrb[0].mxu0
    %v1942 = vadd.f32 %v1830, %v1941
    %v1943 = vpop.f32.mrb[0].mxu0
    %1944 = vmatprep.mubr.bf16.mxu0 0
    %1945 = vmatmul.mubr.bf16.gmra.mrb[0].mxu0 %v218
    %v1946 = vpop.f32.mrb[0].mxu0
    %v1947 = vadd.f32 %v1830, %v1946
    %v1948 = vpop.f32.mrb[0].mxu0
    %v1949 = vpop.f32.mrb[0].mxu0
    %v1950 = vadd.f32 %v1830, %v1949
    %v1951 = vpop.f32.mrb[0].mxu0
    %1952 = vmatprep.mubr.bf16.mxu0 0
    %1953 = vmatmul.mubr.bf16.gmra.mrb[0].mxu0 %v219
    %v1954 = vpop.f32.mrb[0].mxu0
    %v1955 = vadd.f32 %v1830, %v1954
    %v1956 = vpop.f32.mrb[0].mxu0
    %v1957 = vpop.f32.mrb[0].mxu0
    %v1958 = vadd.f32 %v1830, %v1957
    %v1959 = vpop.f32.mrb[0].mxu0
    %1960 = vmatprep.mubr.bf16.mxu0 0
    %1961 = vmatmul.mubr.bf16.gmra.mrb[0].mxu0 %v220
    %v1962 = vpop.f32.mrb[0].mxu0
    %v1963 = vadd.f32 %v1830, %v1962
    %v1964 = vpop.f32.mrb[0].mxu0
    %v1965 = vpop.f32.mrb[0].mxu0
    %v1966 = vadd.f32 %v1830, %v1965
    %v1967 = vpop.f32.mrb[0].mxu0
    %1968 = vmatprep.mubr.bf16.mxu0 0
    %1969 = vmatmul.mubr.bf16.gmra.mrb[0].mxu0 %v221
    %v1970 = vpop.f32.mrb[0].mxu0
    %v1971 = vadd.f32 %v1830, %v1970
    %v1972 = vpop.f32.mrb[0].mxu0
    %v1973 = vpop.f32.mrb[0].mxu0
    %v1974 = vadd.f32 %v1830, %v1973
    %v1975 = vpop.f32.mrb[0].mxu0
    %1976 = vmatprep.mubr.bf16.mxu0 0
    %1977 = vmatmul.mubr.bf16.gmra.mrb[0].mxu0 %v222
    %v1978 = vpop.f32.mrb[0].mxu0
    %v1979 = vadd.f32 %v1830, %v1978
    %v1980 = vpop.f32.mrb[0].mxu0
    %v1981 = vpop.f32.mrb[0].mxu0
    %v1982 = vadd.f32 %v1830, %v1981
    %v1983 = vpop.f32.mrb[0].mxu0
    %1984 = vmatprep.mubr.bf16.mxu0 0
    %1985 = vmatmul.mubr.bf16.gmra.mrb[0].mxu0 %v223
    %v1986 = vpop.f32.mrb[0].mxu0
    %v1987 = vadd.f32 %v1830, %v1986
    %v1988 = vpop.f32.mrb[0].mxu0
    %v1989 = vpop.f32.mrb[0].mxu0
    %v1990 = vadd.f32 %v1830, %v1989
    %v1991 = vpop.f32.mrb[0].mxu0
    %1992 = vmatprep.mubr.bf16.mxu0 0
    %1993 = vmatmul.mubr.bf16.gmra.mrb[0].mxu0 %v224
    %v1994 = vpop.f32.mrb[0].mxu0
    %v1995 = vadd.f32 %v1830, %v1994
    %v1996 = vpop.f32.mrb[0].mxu0
    %v1997 = vpop.f32.mrb[0].mxu0
    %v1998 = vadd.f32 %v1830, %v1997
    %v1999 = vpop.f32.mrb[0].mxu0
    %2000 = vmatprep.mubr.bf16.mxu0 0
    %2001 = vmatmul.mubr.bf16.gmra.mrb[0].mxu0 %v225
    %v2002 = vpop.f32.mrb[0].mxu0
    %v2003 = vadd.f32 %v1830, %v2002
    %v2004 = vpop.f32.mrb[0].mxu0
    %v2005 = vpop.f32.mrb[0].mxu0
    %v2006 = vadd.f32 %v1830, %v2005
    %v2007 = vpop.f32.mrb[0].mxu0
    %2008 = vmatprep.mubr.bf16.mxu0 0
    %2009 = vmatmul.mubr.bf16.gmra.mrb[0].mxu0 %v226
    %v2010 = vpop.f32.mrb[0].mxu0
    %v2011 = vadd.f32 %v1830, %v2010
    %v2012 = vpop.f32.mrb[0].mxu0
    %v2013 = vpop.f32.mrb[0].mxu0
    %v2014 = vadd.f32 %v1830, %v2013
    %v2015 = vpop.f32.mrb[0].mxu0
    %2016 = vmatprep.mubr.bf16.mxu0 0
    %2017 = vmatmul.mubr.bf16.gmra.mrb[0].mxu0 %v227
    %v2018 = vpop.f32.mrb[0].mxu0
    %v2019 = vadd.f32 %v1830, %v2018
    %v2020 = vpop.f32.mrb[0].mxu0
    %v2021 = vpop.f32.mrb[0].mxu0
    %v2022 = vadd.f32 %v1830, %v2021
    %v2023 = vpop.f32.mrb[0].mxu0
    %2024 = vmatprep.mubr.bf16.mxu0 0
    %2025 = vmatmul.mubr.bf16.gmra.mrb[0].mxu0 %v228
    %v2026 = vpop.f32.mrb[0].mxu0
    %v2027 = vadd.f32 %v1830, %v2026
    %v2028 = vpop.f32.mrb[0].mxu0
    %v2029 = vpop.f32.mrb[0].mxu0
    %v2030 = vadd.f32 %v1830, %v2029
    %v2031 = vpop.f32.mrb[0].mxu0
    %2032 = vmatprep.mubr.bf16.mxu0 0
    %2033 = vmatmul.mubr.bf16.gmra.mrb[0].mxu0 %v229
    %v2034 = vpop.f32.mrb[0].mxu0
    %v2035 = vadd.f32 %v1830, %v2034
    %v2036 = vpop.f32.mrb[0].mxu0
    %v2037 = vpop.f32.mrb[0].mxu0
    %v2038 = vadd.f32 %v1830, %v2037
    %v2039 = vpop.f32.mrb[0].mxu0
    %2040 = vdwg.mxu0
    %v2041 = vxor.u32 %v1915, 2147483648
    %v2042 = vxor.u32 %v1918, 2147483648
    %v2043 = vxor.u32 %v1923, 2147483648
    %v2044 = vxor.u32 %v1926, 2147483648
    %v2045 = vxor.u32 %v1931, 2147483648
    %v2046 = vxor.u32 %v1934, 2147483648
    %v2047 = vxor.u32 %v1939, 2147483648
    %v2048 = vxor.u32 %v1942, 2147483648
    %v2049 = vxor.u32 %v1947, 2147483648
    %v2050 = vxor.u32 %v1950, 2147483648
    %v2051 = vxor.u32 %v1955, 2147483648
    %v2052 = vxor.u32 %v1958, 2147483648
    %v2053 = vxor.u32 %v1963, 2147483648
    %v2054 = vxor.u32 %v1966, 2147483648
    %v2055 = vxor.u32 %v1971, 2147483648
    %v2056 = vxor.u32 %v1974, 2147483648
    %v2057 = vxor.u32 %v1979, 2147483648
    %v2058 = vxor.u32 %v1982, 2147483648
    %v2059 = vxor.u32 %v1987, 2147483648
    %v2060 = vxor.u32 %v1990, 2147483648
    %v2061 = vxor.u32 %v1995, 2147483648
    %v2062 = vxor.u32 %v1998, 2147483648
    %v2063 = vxor.u32 %v2003, 2147483648
    %v2064 = vxor.u32 %v2006, 2147483648
    %v2065 = vxor.u32 %v2011, 2147483648
    %v2066 = vxor.u32 %v2014, 2147483648
    %v2067 = vxor.u32 %v2019, 2147483648
    %v2068 = vxor.u32 %v2022, 2147483648
    %v2069 = vxor.u32 %v2027, 2147483648
    %v2070 = vxor.u32 %v2030, 2147483648
    %v2071 = vxor.u32 %v2035, 2147483648
    %v2072 = vxor.u32 %v2038, 2147483648
    %v2073 = vmul.f32 %v2041, 1.442695
    %v2074 = vpow.pop %v2073
    %v2075 = vmul.f32 %v2042, 1.442695
    %v2076 = vpow.pop %v2075
    %v2077 = vmul.f32 %v2043, 1.442695
    %v2078 = vpow.pop %v2077
    %v2079 = vmul.f32 %v2044, 1.442695
    %v2080 = vpow.pop %v2079
    %v2081 = vmul.f32 %v2045, 1.442695
    %v2082 = vpow.pop %v2081
    %v2083 = vmul.f32 %v2046, 1.442695
    %v2084 = vpow.pop %v2083
    %v2085 = vmul.f32 %v2047, 1.442695
    %v2086 = vpow.pop %v2085
    %v2087 = vmul.f32 %v2048, 1.442695
    %v2088 = vpow.pop %v2087
    %v2089 = vmul.f32 %v2049, 1.442695
    %v2090 = vpow.pop %v2089
    %v2091 = vmul.f32 %v2050, 1.442695
    %v2092 = vpow.pop %v2091
    %v2093 = vmul.f32 %v2051, 1.442695
    %v2094 = vpow.pop %v2093
    %v2095 = vmul.f32 %v2052, 1.442695
    %v2096 = vpow.pop %v2095
    %v2097 = vmul.f32 %v2053, 1.442695
    %v2098 = vpow.pop %v2097
    %v2099 = vmul.f32 %v2054, 1.442695
    %v2100 = vpow.pop %v2099
    %v2101 = vmul.f32 %v2055, 1.442695
    %v2102 = vpow.pop %v2101
    %v2103 = vmul.f32 %v2056, 1.442695
    %v2104 = vpow.pop %v2103
    %v2105 = vmul.f32 %v2057, 1.442695
    %v2106 = vpow.pop %v2105
    %v2107 = vmul.f32 %v2058, 1.442695
    %v2108 = vpow.pop %v2107
    %v2109 = vmul.f32 %v2059, 1.442695
    %v2110 = vpow.pop %v2109
    %v2111 = vmul.f32 %v2060, 1.442695
    %v2112 = vpow.pop %v2111
    %v2113 = vmul.f32 %v2061, 1.442695
    %v2114 = vpow.pop %v2113
    %v2115 = vmul.f32 %v2062, 1.442695
    %v2116 = vpow.pop %v2115
    %v2117 = vmul.f32 %v2063, 1.442695
    %v2118 = vpow.pop %v2117
    %v2119 = vmul.f32 %v2064, 1.442695
    %v2120 = vpow.pop %v2119
    %v2121 = vmul.f32 %v2065, 1.442695
    %v2122 = vpow.pop %v2121
    %v2123 = vmul.f32 %v2066, 1.442695
    %v2124 = vpow.pop %v2123
    %v2125 = vmul.f32 %v2067, 1.442695
    %v2126 = vpow.pop %v2125
    %v2127 = vmul.f32 %v2068, 1.442695
    %v2128 = vpow.pop %v2127
    %v2129 = vmul.f32 %v2069, 1.442695
    %v2130 = vpow.pop %v2129
    %v2131 = vmul.f32 %v2070, 1.442695
    %v2132 = vpow.pop %v2131
    %v2133 = vmul.f32 %v2071, 1.442695
    %v2134 = vpow.pop %v2133
    %v2135 = vmul.f32 %v2072, 1.442695
    %v2136 = vpow.pop %v2135
    %v2137 = vadd.f32 %v2074, 1.0
    %v2138 = vadd.f32 %v2076, 1.0
    %v2139 = vadd.f32 %v2078, 1.0
    %v2140 = vadd.f32 %v2080, 1.0
    %v2141 = vadd.f32 %v2082, 1.0
    %v2142 = vadd.f32 %v2084, 1.0
    %v2143 = vadd.f32 %v2086, 1.0
    %v2144 = vadd.f32 %v2088, 1.0
    %v2145 = vadd.f32 %v2090, 1.0
    %v2146 = vadd.f32 %v2092, 1.0
    %v2147 = vadd.f32 %v2094, 1.0
    %v2148 = vadd.f32 %v2096, 1.0
    %v2149 = vadd.f32 %v2098, 1.0
    %v2150 = vadd.f32 %v2100, 1.0
    %v2151 = vadd.f32 %v2102, 1.0
    %v2152 = vadd.f32 %v2104, 1.0
    %v2153 = vadd.f32 %v2106, 1.0
    %v2154 = vadd.f32 %v2108, 1.0
    %v2155 = vadd.f32 %v2110, 1.0
    %v2156 = vadd.f32 %v2112, 1.0
    %v2157 = vadd.f32 %v2114, 1.0
    %v2158 = vadd.f32 %v2116, 1.0
    %v2159 = vadd.f32 %v2118, 1.0
    %v2160 = vadd.f32 %v2120, 1.0
    %v2161 = vadd.f32 %v2122, 1.0
    %v2162 = vadd.f32 %v2124, 1.0
    %v2163 = vadd.f32 %v2126, 1.0
    %v2164 = vadd.f32 %v2128, 1.0
    %v2165 = vadd.f32 %v2130, 1.0
    %v2166 = vadd.f32 %v2132, 1.0
    %v2167 = vadd.f32 %v2134, 1.0
    %v2168 = vadd.f32 %v2136, 1.0
    %v2169 = vrcp.pop %v2137
    %v2170 = vmul.f32 1.0, %v2169
    %v2171 = vrcp.pop %v2138
    %v2172 = vmul.f32 1.0, %v2171
    %v2173 = vrcp.pop %v2139
    %v2174 = vmul.f32 1.0, %v2173
    %v2175 = vrcp.pop %v2140
    %v2176 = vmul.f32 1.0, %v2175
    %v2177 = vrcp.pop %v2141
    %v2178 = vmul.f32 1.0, %v2177
    %v2179 = vrcp.pop %v2142
    %v2180 = vmul.f32 1.0, %v2179
    %v2181 = vrcp.pop %v2143
    %v2182 = vmul.f32 1.0, %v2181
    %v2183 = vrcp.pop %v2144
    %v2184 = vmul.f32 1.0, %v2183
    %v2185 = vrcp.pop %v2145
    %v2186 = vmul.f32 1.0, %v2185
    %v2187 = vrcp.pop %v2146
    %v2188 = vmul.f32 1.0, %v2187
    %v2189 = vrcp.pop %v2147
    %v2190 = vmul.f32 1.0, %v2189
    %v2191 = vrcp.pop %v2148
    %v2192 = vmul.f32 1.0, %v2191
    %v2193 = vrcp.pop %v2149
    %v2194 = vmul.f32 1.0, %v2193
    %v2195 = vrcp.pop %v2150
    %v2196 = vmul.f32 1.0, %v2195
    %v2197 = vrcp.pop %v2151
    %v2198 = vmul.f32 1.0, %v2197
    %v2199 = vrcp.pop %v2152
    %v2200 = vmul.f32 1.0, %v2199
    %v2201 = vrcp.pop %v2153
    %v2202 = vmul.f32 1.0, %v2201
    %v2203 = vrcp.pop %v2154
    %v2204 = vmul.f32 1.0, %v2203
    %v2205 = vrcp.pop %v2155
    %v2206 = vmul.f32 1.0, %v2205
    %v2207 = vrcp.pop %v2156
    %v2208 = vmul.f32 1.0, %v2207
    %v2209 = vrcp.pop %v2157
    %v2210 = vmul.f32 1.0, %v2209
    %v2211 = vrcp.pop %v2158
    %v2212 = vmul.f32 1.0, %v2211
    %v2213 = vrcp.pop %v2159
    %v2214 = vmul.f32 1.0, %v2213
    %v2215 = vrcp.pop %v2160
    %v2216 = vmul.f32 1.0, %v2215
    %v2217 = vrcp.pop %v2161
    %v2218 = vmul.f32 1.0, %v2217
    %v2219 = vrcp.pop %v2162
    %v2220 = vmul.f32 1.0, %v2219
    %v2221 = vrcp.pop %v2163
    %v2222 = vmul.f32 1.0, %v2221
    %v2223 = vrcp.pop %v2164
    %v2224 = vmul.f32 1.0, %v2223
    %v2225 = vrcp.pop %v2165
    %v2226 = vmul.f32 1.0, %v2225
    %v2227 = vrcp.pop %v2166
    %v2228 = vmul.f32 1.0, %v2227
    %v2229 = vrcp.pop %v2167
    %v2230 = vmul.f32 1.0, %v2229
    %v2231 = vrcp.pop %v2168
    %v2232 = vmul.f32 1.0, %v2231
    %v2233 = vmul.f32 %v1915, %v2170
    %v2234 = vmul.f32 %v1918, %v2172
    %v2235 = vmul.f32 %v1923, %v2174
    %v2236 = vmul.f32 %v1926, %v2176
    %v2237 = vmul.f32 %v1931, %v2178
    %v2238 = vmul.f32 %v1934, %v2180
    %v2239 = vmul.f32 %v1939, %v2182
    %v2240 = vmul.f32 %v1942, %v2184
    %v2241 = vmul.f32 %v1947, %v2186
    %v2242 = vmul.f32 %v1950, %v2188
    %v2243 = vmul.f32 %v1955, %v2190
    %v2244 = vmul.f32 %v1958, %v2192
    %v2245 = vmul.f32 %v1963, %v2194
    %v2246 = vmul.f32 %v1966, %v2196
    %v2247 = vmul.f32 %v1971, %v2198
    %v2248 = vmul.f32 %v1974, %v2200
    %v2249 = vmul.f32 %v1979, %v2202
    %v2250 = vmul.f32 %v1982, %v2204
    %v2251 = vmul.f32 %v1987, %v2206
    %v2252 = vmul.f32 %v1990, %v2208
    %v2253 = vmul.f32 %v1995, %v2210
    %v2254 = vmul.f32 %v1998, %v2212
    %v2255 = vmul.f32 %v2003, %v2214
    %v2256 = vmul.f32 %v2006, %v2216
    %v2257 = vmul.f32 %v2011, %v2218
    %v2258 = vmul.f32 %v2014, %v2220
    %v2259 = vmul.f32 %v2019, %v2222
    %v2260 = vmul.f32 %v2022, %v2224
    %v2261 = vmul.f32 %v2027, %v2226
    %v2262 = vmul.f32 %v2030, %v2228
    %v2263 = vmul.f32 %v2035, %v2230
    %v2264 = vmul.f32 %v2038, %v2232
    %v2265 = vld [vmem:[#allocation2] sm:$0xff]
    %v2266 = vld [vmem:[#allocation2 + $0x8] sm:$0xff]
    %v2267 = vld [vmem:[#allocation2 + $0x10] sm:$0xff]
    %v2268 = vld [vmem:[#allocation2 + $0x18] sm:$0xff]
    %v2269 = vld [vmem:[#allocation2 + $0x20] sm:$0xff]
    %v2270 = vld [vmem:[#allocation2 + $0x28] sm:$0xff]
    %v2271 = vld [vmem:[#allocation2 + $0x30] sm:$0xff]
    %v2272 = vld [vmem:[#allocation2 + $0x38] sm:$0xff]
    %v2273 = vld [vmem:[#allocation2 + $0x40] sm:$0xff]
    %v2274 = vld [vmem:[#allocation2 + $0x48] sm:$0xff]
    %v2275 = vld [vmem:[#allocation2 + $0x50] sm:$0xff]
    %v2276 = vld [vmem:[#allocation2 + $0x58] sm:$0xff]
    %v2277 = vld [vmem:[#allocation2 + $0x60] sm:$0xff]
    %v2278 = vld [vmem:[#allocation2 + $0x68] sm:$0xff]
    %v2279 = vld [vmem:[#allocation2 + $0x70] sm:$0xff]
    %v2280 = vld [vmem:[#allocation2 + $0x78] sm:$0xff]
    %v2281 = vld [vmem:[#allocation2 + $0x80] sm:$0xff]
    %v2282 = vld [vmem:[#allocation2 + $0x88] sm:$0xff]
    %v2283 = vld [vmem:[#allocation2 + $0x90] sm:$0xff]
    %v2284 = vld [vmem:[#allocation2 + $0x98] sm:$0xff]
    %v2285 = vld [vmem:[#allocation2 + $0xa0] sm:$0xff]
    %v2286 = vld [vmem:[#allocation2 + $0xa8] sm:$0xff]
    %v2287 = vld [vmem:[#allocation2 + $0xb0] sm:$0xff]
    %v2288 = vld [vmem:[#allocation2 + $0xb8] sm:$0xff]
    %v2289 = vld [vmem:[#allocation2 + $0xc0] sm:$0xff]
    %v2290 = vld [vmem:[#allocation2 + $0xc8] sm:$0xff]
    %v2291 = vld [vmem:[#allocation2 + $0xd0] sm:$0xff]
    %v2292 = vld [vmem:[#allocation2 + $0xd8] sm:$0xff]
    %v2293 = vld [vmem:[#allocation2 + $0xe0] sm:$0xff]
    %v2294 = vld [vmem:[#allocation2 + $0xe8] sm:$0xff]
    %v2295 = vld [vmem:[#allocation2 + $0xf0] sm:$0xff]
    %v2296 = vld [vmem:[#allocation2 + $0xf8] sm:$0xff]
    %v2297 = vpack.c.bf16 %v2234, %v2233
    %v2298 = vpack.c.bf16 %v2236, %v2235
    %v2299 = vpack.c.bf16 %v2238, %v2237
    %v2300 = vpack.c.bf16 %v2240, %v2239
    %v2301 = vpack.c.bf16 %v2242, %v2241
    %v2302 = vpack.c.bf16 %v2244, %v2243
    %v2303 = vpack.c.bf16 %v2246, %v2245
    %v2304 = vpack.c.bf16 %v2248, %v2247
    %v2305 = vpack.c.bf16 %v2250, %v2249
    %v2306 = vpack.c.bf16 %v2252, %v2251
    %v2307 = vpack.c.bf16 %v2254, %v2253
    %v2308 = vpack.c.bf16 %v2256, %v2255
    %v2309 = vpack.c.bf16 %v2258, %v2257
    %v2310 = vpack.c.bf16 %v2260, %v2259
    %v2311 = vpack.c.bf16 %v2262, %v2261
    %v2312 = vpack.c.bf16 %v2264, %v2263
    %v2313 = vld [vmem:[#allocation8 + $0x80] sm:$0xf]
    %v2314 = vld [vmem:[#allocation8 + $0x84] sm:$0xf]
    %v2315 = vld [vmem:[#allocation8 + $0x88] sm:$0xf]
    %v2316 = vld [vmem:[#allocation8 + $0x8c] sm:$0xf]
    %v2317 = vld [vmem:[#allocation8 + $0x90] sm:$0xf]
    %v2318 = vld [vmem:[#allocation8 + $0x94] sm:$0xf]
    %v2319 = vld [vmem:[#allocation8 + $0x98] sm:$0xf]
    %v2320 = vld [vmem:[#allocation8 + $0x9c] sm:$0xf]
    %v2321 = vld [vmem:[#allocation8 + $0xa0] sm:$0xf]
    %v2322 = vld [vmem:[#allocation8 + $0xa4] sm:$0xf]
    %v2323 = vld [vmem:[#allocation8 + $0xa8] sm:$0xf]
    %v2324 = vld [vmem:[#allocation8 + $0xac] sm:$0xf]
    %v2325 = vld [vmem:[#allocation8 + $0xb0] sm:$0xf]
    %v2326 = vld [vmem:[#allocation8 + $0xb4] sm:$0xf]
    %v2327 = vld [vmem:[#allocation8 + $0xb8] sm:$0xf]
    %v2328 = vld [vmem:[#allocation8 + $0xbc] sm:$0xf]
    %v2345 = vunpack.c.l.b16 %v2313
    %v2346 = vunpack.c.l.b16 %v2314
    %v2347 = vunpack.c.l.b16 %v2315
    %v2348 = vunpack.c.l.b16 %v2316
    %v2349 = vunpack.c.l.b16 %v2317
    %v2350 = vunpack.c.l.b16 %v2318
    %v2351 = vunpack.c.l.b16 %v2319
    %v2352 = vunpack.c.l.b16 %v2320
    %v2353 = vunpack.c.l.b16 %v2321
    %v2354 = vunpack.c.l.b16 %v2322
    %v2355 = vunpack.c.l.b16 %v2323
    %v2356 = vunpack.c.l.b16 %v2324
    %v2357 = vunpack.c.l.b16 %v2325
    %v2358 = vunpack.c.l.b16 %v2326
    %v2359 = vunpack.c.l.b16 %v2327
    %v2360 = vunpack.c.l.b16 %v2328
    %v2361 = vpack.c.b16 %v2346, %v2345
    %v2362 = vpack.c.b16 %v2348, %v2347
    %v2363 = vpack.c.b16 %v2350, %v2349
    %v2364 = vpack.c.b16 %v2352, %v2351
    %v2365 = vpack.c.b16 %v2354, %v2353
    %v2366 = vpack.c.b16 %v2356, %v2355
    %v2367 = vpack.c.b16 %v2358, %v2357
    %v2368 = vpack.c.b16 %v2360, %v2359
    %2377 = vmatprep.subr.bf16.mxu0 0
    %2378 = vmatpush1.bf16.msra.mxu0 %v2361
    %2379 = vmatprep.subr.bf16.mxu0 0
    %2380 = vmatpush1.bf16.msra.mxu0 %v2362
    %2381 = vmatprep.subr.bf16.mxu0 0
    %2382 = vmatpush1.bf16.msra.mxu0 %v2363
    %2383 = vmatprep.subr.bf16.mxu0 0
    %2384 = vmatpush1.bf16.msra.mxu0 %v2364
    %2385 = vmatprep.subr.bf16.mxu0 0
    %2386 = vmatpush1.bf16.msra.mxu0 %v2365
    %2387 = vmatprep.subr.bf16.mxu0 0
    %2388 = vmatpush1.bf16.msra.mxu0 %v2366
    %2389 = vmatprep.subr.bf16.mxu0 0
    %2390 = vmatpush1.bf16.msra.mxu0 %v2367
    %2391 = vmatprep.subr.bf16.mxu0 0
    %2392 = vmatpush1.bf16.msra.mxu0 %v2368
    %2393 = vmatprep.subr.bf16.mxu0 0
    %2394 = vmatpush1.bf16.msra.mxu0 0
    %2395 = vmatprep.subr.bf16.mxu0 0
    %2396 = vmatpush1.bf16.msra.mxu0 0
    %2397 = vmatprep.subr.bf16.mxu0 0
    %2398 = vmatpush1.bf16.msra.mxu0 0
    %2399 = vmatprep.subr.bf16.mxu0 0
    %2400 = vmatpush1.bf16.msra.mxu0 0
    %2401 = vmatprep.subr.bf16.mxu0 0
    %2402 = vmatpush1.bf16.msra.mxu0 0
    %2403 = vmatprep.subr.bf16.mxu0 0
    %2404 = vmatpush1.bf16.msra.mxu0 0
    %2405 = vmatprep.subr.bf16.mxu0 0
    %2406 = vmatpush1.bf16.msra.mxu0 0
    %2407 = vmatprep.subr.bf16.mxu0 0
    %2408 = vmatpush1.bf16.msra.mxu0 0
    %2409 = vmatprep.mubr.bf16.mxu0 0
    %2410 = vmatmul.mubr.bf16.gmra.mrb[0].mxu0 %v2297
    %v2411 = vpop.f32.mrb[0].mxu0
    %v2412 = vadd.f32 0.0, %v2411
    %v2413 = vpop.f32.mrb[0].mxu0
    %v2414 = vpop.f32.mrb[0].mxu0
    %v2415 = vadd.f32 0.0, %v2414
    %v2416 = vpop.f32.mrb[0].mxu0
    %2417 = vmatprep.mubr.bf16.mxu0 0
    %2418 = vmatmul.mubr.bf16.gmra.mrb[0].mxu0 %v2298
    %v2419 = vpop.f32.mrb[0].mxu0
    %v2420 = vadd.f32 0.0, %v2419
    %v2421 = vpop.f32.mrb[0].mxu0
    %v2422 = vpop.f32.mrb[0].mxu0
    %v2423 = vadd.f32 0.0, %v2422
    %v2424 = vpop.f32.mrb[0].mxu0
    %2425 = vmatprep.mubr.bf16.mxu0 0
    %2426 = vmatmul.mubr.bf16.gmra.mrb[0].mxu0 %v2299
    %v2427 = vpop.f32.mrb[0].mxu0
    %v2428 = vadd.f32 0.0, %v2427
    %v2429 = vpop.f32.mrb[0].mxu0
    %v2430 = vpop.f32.mrb[0].mxu0
    %v2431 = vadd.f32 0.0, %v2430
    %v2432 = vpop.f32.mrb[0].mxu0
    %2433 = vmatprep.mubr.bf16.mxu0 0
    %2434 = vmatmul.mubr.bf16.gmra.mrb[0].mxu0 %v2300
    %v2435 = vpop.f32.mrb[0].mxu0
    %v2436 = vadd.f32 0.0, %v2435
    %v2437 = vpop.f32.mrb[0].mxu0
    %v2438 = vpop.f32.mrb[0].mxu0
    %v2439 = vadd.f32 0.0, %v2438
    %v2440 = vpop.f32.mrb[0].mxu0
    %2441 = vmatprep.mubr.bf16.mxu0 0
    %2442 = vmatmul.mubr.bf16.gmra.mrb[0].mxu0 %v2301
    %v2443 = vpop.f32.mrb[0].mxu0
    %v2444 = vadd.f32 0.0, %v2443
    %v2445 = vpop.f32.mrb[0].mxu0
    %v2446 = vpop.f32.mrb[0].mxu0
    %v2447 = vadd.f32 0.0, %v2446
    %v2448 = vpop.f32.mrb[0].mxu0
    %2449 = vmatprep.mubr.bf16.mxu0 0
    %2450 = vmatmul.mubr.bf16.gmra.mrb[0].mxu0 %v2302
    %v2451 = vpop.f32.mrb[0].mxu0
    %v2452 = vadd.f32 0.0, %v2451
    %v2453 = vpop.f32.mrb[0].mxu0
    %v2454 = vpop.f32.mrb[0].mxu0
    %v2455 = vadd.f32 0.0, %v2454
    %v2456 = vpop.f32.mrb[0].mxu0
    %2457 = vmatprep.mubr.bf16.mxu0 0
    %2458 = vmatmul.mubr.bf16.gmra.mrb[0].mxu0 %v2303
    %v2459 = vpop.f32.mrb[0].mxu0
    %v2460 = vadd.f32 0.0, %v2459
    %v2461 = vpop.f32.mrb[0].mxu0
    %v2462 = vpop.f32.mrb[0].mxu0
    %v2463 = vadd.f32 0.0, %v2462
    %v2464 = vpop.f32.mrb[0].mxu0
    %2465 = vmatprep.mubr.bf16.mxu0 0
    %2466 = vmatmul.mubr.bf16.gmra.mrb[0].mxu0 %v2304
    %v2467 = vpop.f32.mrb[0].mxu0
    %v2468 = vadd.f32 0.0, %v2467
    %v2469 = vpop.f32.mrb[0].mxu0
    %v2470 = vpop.f32.mrb[0].mxu0
    %v2471 = vadd.f32 0.0, %v2470
    %v2472 = vpop.f32.mrb[0].mxu0
    %2473 = vmatprep.mubr.bf16.mxu0 0
    %2474 = vmatmul.mubr.bf16.gmra.mrb[0].mxu0 %v2305
    %v2475 = vpop.f32.mrb[0].mxu0
    %v2476 = vadd.f32 0.0, %v2475
    %v2477 = vpop.f32.mrb[0].mxu0
    %v2478 = vpop.f32.mrb[0].mxu0
    %v2479 = vadd.f32 0.0, %v2478
    %v2480 = vpop.f32.mrb[0].mxu0
    %2481 = vmatprep.mubr.bf16.mxu0 0
    %2482 = vmatmul.mubr.bf16.gmra.mrb[0].mxu0 %v2306
    %v2483 = vpop.f32.mrb[0].mxu0
    %v2484 = vadd.f32 0.0, %v2483
    %v2485 = vpop.f32.mrb[0].mxu0
    %v2486 = vpop.f32.mrb[0].mxu0
    %v2487 = vadd.f32 0.0, %v2486
    %v2488 = vpop.f32.mrb[0].mxu0
    %2489 = vmatprep.mubr.bf16.mxu0 0
    %2490 = vmatmul.mubr.bf16.gmra.mrb[0].mxu0 %v2307
    %v2491 = vpop.f32.mrb[0].mxu0
    %v2492 = vadd.f32 0.0, %v2491
    %v2493 = vpop.f32.mrb[0].mxu0
    %v2494 = vpop.f32.mrb[0].mxu0
    %v2495 = vadd.f32 0.0, %v2494
    %v2496 = vpop.f32.mrb[0].mxu0
    %2497 = vmatprep.mubr.bf16.mxu0 0
    %2498 = vmatmul.mubr.bf16.gmra.mrb[0].mxu0 %v2308
    %v2499 = vpop.f32.mrb[0].mxu0
    %v2500 = vadd.f32 0.0, %v2499
    %v2501 = vpop.f32.mrb[0].mxu0
    %v2502 = vpop.f32.mrb[0].mxu0
    %v2503 = vadd.f32 0.0, %v2502
    %v2504 = vpop.f32.mrb[0].mxu0
    %2505 = vmatprep.mubr.bf16.mxu0 0
    %2506 = vmatmul.mubr.bf16.gmra.mrb[0].mxu0 %v2309
    %v2507 = vpop.f32.mrb[0].mxu0
    %v2508 = vadd.f32 0.0, %v2507
    %v2509 = vpop.f32.mrb[0].mxu0
    %v2510 = vpop.f32.mrb[0].mxu0
    %v2511 = vadd.f32 0.0, %v2510
    %v2512 = vpop.f32.mrb[0].mxu0
    %2513 = vmatprep.mubr.bf16.mxu0 0
    %2514 = vmatmul.mubr.bf16.gmra.mrb[0].mxu0 %v2310
    %v2515 = vpop.f32.mrb[0].mxu0
    %v2516 = vadd.f32 0.0, %v2515
    %v2517 = vpop.f32.mrb[0].mxu0
    %v2518 = vpop.f32.mrb[0].mxu0
    %v2519 = vadd.f32 0.0, %v2518
    %v2520 = vpop.f32.mrb[0].mxu0
    %2521 = vmatprep.mubr.bf16.mxu0 0
    %2522 = vmatmul.mubr.bf16.gmra.mrb[0].mxu0 %v2311
    %v2523 = vpop.f32.mrb[0].mxu0
    %v2524 = vadd.f32 0.0, %v2523
    %v2525 = vpop.f32.mrb[0].mxu0
    %v2526 = vpop.f32.mrb[0].mxu0
    %v2527 = vadd.f32 0.0, %v2526
    %v2528 = vpop.f32.mrb[0].mxu0
    %2529 = vmatprep.mubr.bf16.mxu0 0
    %2530 = vmatmul.mubr.bf16.gmra.mrb[0].mxu0 %v2312
    %v2531 = vpop.f32.mrb[0].mxu0
    %v2532 = vadd.f32 0.0, %v2531
    %v2533 = vpop.f32.mrb[0].mxu0
    %v2534 = vpop.f32.mrb[0].mxu0
    %v2535 = vadd.f32 0.0, %v2534
    %v2536 = vpop.f32.mrb[0].mxu0
    %2537 = vdwg.mxu0
    %v2538 = vadd.f32 %v2265, %v2412
    %v2539 = vadd.f32 %v2266, %v2415
    %v2540 = vadd.f32 %v2267, %v2420
    %v2541 = vadd.f32 %v2268, %v2423
    %v2542 = vadd.f32 %v2269, %v2428
    %v2543 = vadd.f32 %v2270, %v2431
    %v2544 = vadd.f32 %v2271, %v2436
    %v2545 = vadd.f32 %v2272, %v2439
    %v2546 = vadd.f32 %v2273, %v2444
    %v2547 = vadd.f32 %v2274, %v2447
    %v2548 = vadd.f32 %v2275, %v2452
    %v2549 = vadd.f32 %v2276, %v2455
    %v2550 = vadd.f32 %v2277, %v2460
    %v2551 = vadd.f32 %v2278, %v2463
    %v2552 = vadd.f32 %v2279, %v2468
    %v2553 = vadd.f32 %v2280, %v2471
    %v2554 = vadd.f32 %v2281, %v2476
    %v2555 = vadd.f32 %v2282, %v2479
    %v2556 = vadd.f32 %v2283, %v2484
    %v2557 = vadd.f32 %v2284, %v2487
    %v2558 = vadd.f32 %v2285, %v2492
    %v2559 = vadd.f32 %v2286, %v2495
    %v2560 = vadd.f32 %v2287, %v2500
    %v2561 = vadd.f32 %v2288, %v2503
    %v2562 = vadd.f32 %v2289, %v2508
    %v2563 = vadd.f32 %v2290, %v2511
    %v2564 = vadd.f32 %v2291, %v2516
    %v2565 = vadd.f32 %v2292, %v2519
    %v2566 = vadd.f32 %v2293, %v2524
    %v2567 = vadd.f32 %v2294, %v2527
    %v2568 = vadd.f32 %v2295, %v2532
    %v2569 = vadd.f32 %v2296, %v2535
    %2570 = vst [vmem:[#allocation2] sm:$0xff] %v2538
    %2571 = vst [vmem:[#allocation2 + $0x8] sm:$0xff] %v2539
    %2572 = vst [vmem:[#allocation2 + $0x10] sm:$0xff] %v2540
    %2573 = vst [vmem:[#allocation2 + $0x18] sm:$0xff] %v2541
    %2574 = vst [vmem:[#allocation2 + $0x20] sm:$0xff] %v2542
    %2575 = vst [vmem:[#allocation2 + $0x28] sm:$0xff] %v2543
    %2576 = vst [vmem:[#allocation2 + $0x30] sm:$0xff] %v2544
    %2577 = vst [vmem:[#allocation2 + $0x38] sm:$0xff] %v2545
    %2578 = vst [vmem:[#allocation2 + $0x40] sm:$0xff] %v2546
    %2579 = vst [vmem:[#allocation2 + $0x48] sm:$0xff] %v2547
    %2580 = vst [vmem:[#allocation2 + $0x50] sm:$0xff] %v2548
    %2581 = vst [vmem:[#allocation2 + $0x58] sm:$0xff] %v2549
    %2582 = vst [vmem:[#allocation2 + $0x60] sm:$0xff] %v2550
    %2583 = vst [vmem:[#allocation2 + $0x68] sm:$0xff] %v2551
    %2584 = vst [vmem:[#allocation2 + $0x70] sm:$0xff] %v2552
    %2585 = vst [vmem:[#allocation2 + $0x78] sm:$0xff] %v2553
    %2586 = vst [vmem:[#allocation2 + $0x80] sm:$0xff] %v2554
    %2587 = vst [vmem:[#allocation2 + $0x88] sm:$0xff] %v2555
    %2588 = vst [vmem:[#allocation2 + $0x90] sm:$0xff] %v2556
    %2589 = vst [vmem:[#allocation2 + $0x98] sm:$0xff] %v2557
    %2590 = vst [vmem:[#allocation2 + $0xa0] sm:$0xff] %v2558
    %2591 = vst [vmem:[#allocation2 + $0xa8] sm:$0xff] %v2559
    %2592 = vst [vmem:[#allocation2 + $0xb0] sm:$0xff] %v2560
    %2593 = vst [vmem:[#allocation2 + $0xb8] sm:$0xff] %v2561
    %2594 = vst [vmem:[#allocation2 + $0xc0] sm:$0xff] %v2562
    %2595 = vst [vmem:[#allocation2 + $0xc8] sm:$0xff] %v2563
    %2596 = vst [vmem:[#allocation2 + $0xd0] sm:$0xff] %v2564
    %2597 = vst [vmem:[#allocation2 + $0xd8] sm:$0xff] %v2565
    %2598 = vst [vmem:[#allocation2 + $0xe0] sm:$0xff] %v2566
    %2599 = vst [vmem:[#allocation2 + $0xe8] sm:$0xff] %v2567
    %2600 = vst [vmem:[#allocation2 + $0xf0] sm:$0xff] %v2568
    %2601 = vst [vmem:[#allocation2 + $0xf8] sm:$0xff] %v2569
    %v2602 = vld [vmem:[#allocation2] sm:$0xff]
    %v2603 = vld [vmem:[#allocation2 + $0x8] sm:$0xff]
    %v2604 = vld [vmem:[#allocation2 + $0x10] sm:$0xff]
    %v2605 = vld [vmem:[#allocation2 + $0x18] sm:$0xff]
    %v2606 = vld [vmem:[#allocation2 + $0x20] sm:$0xff]
    %v2607 = vld [vmem:[#allocation2 + $0x28] sm:$0xff]
    %v2608 = vld [vmem:[#allocation2 + $0x30] sm:$0xff]
    %v2609 = vld [vmem:[#allocation2 + $0x38] sm:$0xff]
    %v2610 = vld [vmem:[#allocation2 + $0x40] sm:$0xff]
    %v2611 = vld [vmem:[#allocation2 + $0x48] sm:$0xff]
    %v2612 = vld [vmem:[#allocation2 + $0x50] sm:$0xff]
    %v2613 = vld [vmem:[#allocation2 + $0x58] sm:$0xff]
    %v2614 = vld [vmem:[#allocation2 + $0x60] sm:$0xff]
    %v2615 = vld [vmem:[#allocation2 + $0x68] sm:$0xff]
    %v2616 = vld [vmem:[#allocation2 + $0x70] sm:$0xff]
    %v2617 = vld [vmem:[#allocation2 + $0x78] sm:$0xff]
    %v2618 = vld [vmem:[#allocation2 + $0x80] sm:$0xff]
    %v2619 = vld [vmem:[#allocation2 + $0x88] sm:$0xff]
    %v2620 = vld [vmem:[#allocation2 + $0x90] sm:$0xff]
    %v2621 = vld [vmem:[#allocation2 + $0x98] sm:$0xff]
    %v2622 = vld [vmem:[#allocation2 + $0xa0] sm:$0xff]
    %v2623 = vld [vmem:[#allocation2 + $0xa8] sm:$0xff]
    %v2624 = vld [vmem:[#allocation2 + $0xb0] sm:$0xff]
    %v2625 = vld [vmem:[#allocation2 + $0xb8] sm:$0xff]
    %v2626 = vld [vmem:[#allocation2 + $0xc0] sm:$0xff]
    %v2627 = vld [vmem:[#allocation2 + $0xc8] sm:$0xff]
    %v2628 = vld [vmem:[#allocation2 + $0xd0] sm:$0xff]
    %v2629 = vld [vmem:[#allocation2 + $0xd8] sm:$0xff]
    %v2630 = vld [vmem:[#allocation2 + $0xe0] sm:$0xff]
    %v2631 = vld [vmem:[#allocation2 + $0xe8] sm:$0xff]
    %v2632 = vld [vmem:[#allocation2 + $0xf0] sm:$0xff]
    %v2633 = vld [vmem:[#allocation2 + $0xf8] sm:$0xff]
    %v2634 = vld [vmem:[%s4] sm:$0x1]
    %v2636 = vlaneseq
    %v2637 = vshrl.u32 %v2636, 7
    %v2638 = vsub.s32 0, %v2637
    %v2639 = vrot.slane %v2634, %v2638
    %v2641 = vadd.f32 %v2602, %v2639
    %v2642 = vadd.f32 %v2603, %v2639
    %v2643 = vadd.f32 %v2604, %v2639
    %v2644 = vadd.f32 %v2605, %v2639
    %v2645 = vadd.f32 %v2606, %v2639
    %v2646 = vadd.f32 %v2607, %v2639
    %v2647 = vadd.f32 %v2608, %v2639
    %v2648 = vadd.f32 %v2609, %v2639
    %v2649 = vadd.f32 %v2610, %v2639
    %v2650 = vadd.f32 %v2611, %v2639
    %v2651 = vadd.f32 %v2612, %v2639
    %v2652 = vadd.f32 %v2613, %v2639
    %v2653 = vadd.f32 %v2614, %v2639
    %v2654 = vadd.f32 %v2615, %v2639
    %v2655 = vadd.f32 %v2616, %v2639
    %v2656 = vadd.f32 %v2617, %v2639
    %v2657 = vadd.f32 %v2618, %v2639
    %v2658 = vadd.f32 %v2619, %v2639
    %v2659 = vadd.f32 %v2620, %v2639
    %v2660 = vadd.f32 %v2621, %v2639
    %v2661 = vadd.f32 %v2622, %v2639
    %v2662 = vadd.f32 %v2623, %v2639
    %v2663 = vadd.f32 %v2624, %v2639
    %v2664 = vadd.f32 %v2625, %v2639
    %v2665 = vadd.f32 %v2626, %v2639
    %v2666 = vadd.f32 %v2627, %v2639
    %v2667 = vadd.f32 %v2628, %v2639
    %v2668 = vadd.f32 %v2629, %v2639
    %v2669 = vadd.f32 %v2630, %v2639
    %v2670 = vadd.f32 %v2631, %v2639
    %v2671 = vadd.f32 %v2632, %v2639
    %v2672 = vadd.f32 %v2633, %v2639
    %v2673 = vpack.c.bf16 %v2642, %v2641
    %v2674 = vpack.c.bf16 %v2644, %v2643
    %v2675 = vpack.c.bf16 %v2646, %v2645
    %v2676 = vpack.c.bf16 %v2648, %v2647
    %v2677 = vpack.c.bf16 %v2650, %v2649
    %v2678 = vpack.c.bf16 %v2652, %v2651
    %v2679 = vpack.c.bf16 %v2654, %v2653
    %v2680 = vpack.c.bf16 %v2656, %v2655
    %v2681 = vpack.c.bf16 %v2658, %v2657
    %v2682 = vpack.c.bf16 %v2660, %v2659
    %v2683 = vpack.c.bf16 %v2662, %v2661
    %v2684 = vpack.c.bf16 %v2664, %v2663
    %v2685 = vpack.c.bf16 %v2666, %v2665
    %v2686 = vpack.c.bf16 %v2668, %v2667
    %v2687 = vpack.c.bf16 %v2670, %v2669
    %v2688 = vpack.c.bf16 %v2672, %v2671
    %v2705 = vunpack.c.l.b16 %v2673
    %v2706 = vunpack.c.h.b16 %v2673
    %v2707 = vunpack.c.l.b16 %v2674
    %v2708 = vunpack.c.h.b16 %v2674
    %v2709 = vunpack.c.l.b16 %v2675
    %v2710 = vunpack.c.h.b16 %v2675
    %v2711 = vunpack.c.l.b16 %v2676
    %v2712 = vunpack.c.h.b16 %v2676
    %v2713 = vunpack.c.l.b16 %v2677
    %v2714 = vunpack.c.h.b16 %v2677
    %v2715 = vunpack.c.l.b16 %v2678
    %v2716 = vunpack.c.h.b16 %v2678
    %v2717 = vunpack.c.l.b16 %v2679
    %v2718 = vunpack.c.h.b16 %v2679
    %v2719 = vunpack.c.l.b16 %v2680
    %v2720 = vunpack.c.h.b16 %v2680
    %v2721 = vunpack.c.l.b16 %v2681
    %v2722 = vunpack.c.h.b16 %v2681
    %v2723 = vunpack.c.l.b16 %v2682
    %v2724 = vunpack.c.h.b16 %v2682
    %v2725 = vunpack.c.l.b16 %v2683
    %v2726 = vunpack.c.h.b16 %v2683
    %v2727 = vunpack.c.l.b16 %v2684
    %v2728 = vunpack.c.h.b16 %v2684
    %v2729 = vunpack.c.l.b16 %v2685
    %v2730 = vunpack.c.h.b16 %v2685
    %v2731 = vunpack.c.l.b16 %v2686
    %v2732 = vunpack.c.h.b16 %v2686
    %v2733 = vunpack.c.l.b16 %v2687
    %v2734 = vunpack.c.h.b16 %v2687
    %v2735 = vunpack.c.l.b16 %v2688
    %v2736 = vunpack.c.h.b16 %v2688
    %v2737 = vpack.c.b16 %v2705, %v2705
    %v2738 = vpack.c.b16 %v2706, %v2706
    %v2739 = vpack.c.b16 %v2707, %v2707
    %v2740 = vpack.c.b16 %v2708, %v2708
    %v2741 = vpack.c.b16 %v2709, %v2709
    %v2742 = vpack.c.b16 %v2710, %v2710
    %v2743 = vpack.c.b16 %v2711, %v2711
    %v2744 = vpack.c.b16 %v2712, %v2712
    %v2745 = vpack.c.b16 %v2713, %v2713
    %v2746 = vpack.c.b16 %v2714, %v2714
    %v2747 = vpack.c.b16 %v2715, %v2715
    %v2748 = vpack.c.b16 %v2716, %v2716
    %v2749 = vpack.c.b16 %v2717, %v2717
    %v2750 = vpack.c.b16 %v2718, %v2718
    %v2751 = vpack.c.b16 %v2719, %v2719
    %v2752 = vpack.c.b16 %v2720, %v2720
    %v2753 = vpack.c.b16 %v2721, %v2721
    %v2754 = vpack.c.b16 %v2722, %v2722
    %v2755 = vpack.c.b16 %v2723, %v2723
    %v2756 = vpack.c.b16 %v2724, %v2724
    %v2757 = vpack.c.b16 %v2725, %v2725
    %v2758 = vpack.c.b16 %v2726, %v2726
    %v2759 = vpack.c.b16 %v2727, %v2727
    %v2760 = vpack.c.b16 %v2728, %v2728
    %v2761 = vpack.c.b16 %v2729, %v2729
    %v2762 = vpack.c.b16 %v2730, %v2730
    %v2763 = vpack.c.b16 %v2731, %v2731
    %v2764 = vpack.c.b16 %v2732, %v2732
    %v2765 = vpack.c.b16 %v2733, %v2733
    %v2766 = vpack.c.b16 %v2734, %v2734
    %v2767 = vpack.c.b16 %v2735, %v2735
    %v2768 = vpack.c.b16 %v2736, %v2736
    %2801 = vst [vmem:[#allocation9] sm:$0xf] %v2737
    %2802 = vst [vmem:[#allocation9 + $0x4] sm:$0xf] %v2738
    %2803 = vst [vmem:[#allocation9 + $0x8] sm:$0xf] %v2739
    %2804 = vst [vmem:[#allocation9 + $0xc] sm:$0xf] %v2740
    %2805 = vst [vmem:[#allocation9 + $0x10] sm:$0xf] %v2741
    %2806 = vst [vmem:[#allocation9 + $0x14] sm:$0xf] %v2742
    %2807 = vst [vmem:[#allocation9 + $0x18] sm:$0xf] %v2743
    %2808 = vst [vmem:[#allocation9 + $0x1c] sm:$0xf] %v2744
    %2809 = vst [vmem:[#allocation9 + $0x20] sm:$0xf] %v2745
    %2810 = vst [vmem:[#allocation9 + $0x24] sm:$0xf] %v2746
    %2811 = vst [vmem:[#allocation9 + $0x28] sm:$0xf] %v2747
    %2812 = vst [vmem:[#allocation9 + $0x2c] sm:$0xf] %v2748
    %2813 = vst [vmem:[#allocation9 + $0x30] sm:$0xf] %v2749
    %2814 = vst [vmem:[#allocation9 + $0x34] sm:$0xf] %v2750
    %2815 = vst [vmem:[#allocation9 + $0x38] sm:$0xf] %v2751
    %2816 = vst [vmem:[#allocation9 + $0x3c] sm:$0xf] %v2752
    %2817 = vst [vmem:[#allocation9 + $0x40] sm:$0xf] %v2753
    %2818 = vst [vmem:[#allocation9 + $0x44] sm:$0xf] %v2754
    %2819 = vst [vmem:[#allocation9 + $0x48] sm:$0xf] %v2755
    %2820 = vst [vmem:[#allocation9 + $0x4c] sm:$0xf] %v2756
    %2821 = vst [vmem:[#allocation9 + $0x50] sm:$0xf] %v2757
    %2822 = vst [vmem:[#allocation9 + $0x54] sm:$0xf] %v2758
    %2823 = vst [vmem:[#allocation9 + $0x58] sm:$0xf] %v2759
    %2824 = vst [vmem:[#allocation9 + $0x5c] sm:$0xf] %v2760
    %2825 = vst [vmem:[#allocation9 + $0x60] sm:$0xf] %v2761
    %2826 = vst [vmem:[#allocation9 + $0x64] sm:$0xf] %v2762
    %2827 = vst [vmem:[#allocation9 + $0x68] sm:$0xf] %v2763
    %2828 = vst [vmem:[#allocation9 + $0x6c] sm:$0xf] %v2764
    %2829 = vst [vmem:[#allocation9 + $0x70] sm:$0xf] %v2765
    %2830 = vst [vmem:[#allocation9 + $0x74] sm:$0xf] %v2766
    %2831 = vst [vmem:[#allocation9 + $0x78] sm:$0xf] %v2767
    %2832 = vst [vmem:[#allocation9 + $0x7c] sm:$0xf] %v2768
    // Predicated region
    $region34: #{tpu_custom_call.1} parent=1 // pred_check
      _
    $region35: #{tpu_custom_call.1} parent=1 // pred_check_branch
      %2834 = sbr.rel (0) target = $region37
    $region36: #{tpu_custom_call.1} parent=1 // pred_region
      %s2836 = ssub.s32 2048, 2048
      %2837 = vsyncadd [#allocation5], %s2836
      %s2838 = sshll.u32 [#allocation9], 4
      %s2839 = int_to_ptr.vmem [resolvable:$true] %s2838
      %2844 = dma.vmem_to_hbm [thread:$0]  %s2839, 2048, %s5, [#allocation5], 64, 64, 4
    $region37: #{tpu_custom_call.1} parent=1 // pred_fallthru
      _
    // Predicated region
    $region38: #{tpu_custom_call.1} parent=1 // pred_check
      _
    $region39: #{tpu_custom_call.1} parent=1 // pred_check_branch
      %2846 = sbr.rel (0) target = $region41
    $region40: #{tpu_custom_call.1} parent=1 // pred_region
      %2847 = dma.done [#allocation5], 2048
    $region41: #{tpu_custom_call.1} parent=1 // pred_fallthru
      _
    %2848 = vsyncpa [#allocation4], 1
    %2849 = vsyncpa [#allocation7], 1
    %2850 = vsyncpa [#allocation5], 1

</llo_original>
